<compile_context>
chip_gen: v5e
topology: v5e:2x2
jax: 0.10.0
libtpu: 0.0.40
codegen_flags: <defaults>
</compile_context>

<pallas_src>
import jax
import jax.numpy as jnp
from jax.experimental import pallas as pl
from jax.experimental.pallas import tpu as pltpu


def _msp_kernel(x_ref, f1_w_ref, m2_w_ref, inf1_w_ref, inf2_w_ref,
                fp1_w_ref, fp2_w_ref, bias_ref, o_ref):
    f32 = jnp.float32
    Bt, Cin, L = x_ref.shape
    W, Cout1, _ = f1_w_ref.shape           # fused first-layer conv taps / out channels
    nm2, channels = m2_w_ref.shape          # num_motifs - 2, hidden channels
    Wi, _, nm = inf1_w_ref.shape            # influence receptive field, num_motifs
    out_size = o_ref.shape[1]
    c_sp = nm - nm2                         # splicepoint channels (2)
    pad1 = (W - 1) // 2
    pad2 = (Wi - 1) // 2

    # bias slab columns: 0=fused first-layer conv, 1=m2, 2=threshold,
    #                    3=inf1, 4=inf2, 5=fp1, 6=fp2
    def bias(col, k):
        return bias_ref[:k, col:col + 1]    # (k, 1) column, broadcasts over lanes

    # Static loop over the sequences packed into this grid step (amortizes the
    # ~0.35us per-step overhead; each iteration is pure (C, L) lane-dense work).
    for bi in range(Bt):
        x = x_ref[bi]                                                  # (Cin, L)
        xpad = jnp.concatenate(
            [jnp.zeros((Cin, pad1), f32), x,
             jnp.zeros((Cin, W - 1 - pad1), f32)], axis=-1)            # (Cin, L+W-1)

        # ---- fused first-layer conv [motif conv1 | splicepoint | residual] ----
        # shift-and-accumulate: one small matmul per tap, lane-dense N = L.
        acc1 = jnp.zeros((Cout1, L), f32)
        for t in range(W):
            acc1 = acc1 + jnp.dot(f1_w_ref[t], xpad[:, t:t + L],
                                  preferred_element_type=f32)
        acc1 = acc1 + bias(0, Cout1)

        h = jax.nn.relu(acc1[:channels])                               # (channels, L)
        sp = acc1[channels:channels + c_sp]                            # (2, L)
        spr = acc1[channels + c_sp:]                                   # (out_size, L)
        spr = spr - jnp.max(spr, axis=0, keepdims=True)                # log-softmax
        spr = spr - jnp.log(jnp.sum(jnp.exp(spr), axis=0, keepdims=True))

        # ---- motif pointwise head + hard sparsity threshold (SparsityEnforcer) --
        motifs = jax.nn.relu(
            jnp.dot(m2_w_ref[...], h, preferred_element_type=f32) + bias(1, nm2))
        sparse = jnp.where(motifs > bias(2, nm2), motifs, 0.0)         # (nm2, L)

        # post_sparse = [sparse motifs ; splicepoint results]            (nm, L)
        ps = jnp.concatenate([sparse, sp], axis=0)

        # ---- influence_calculator: same-padded conv, receptive field cl+1 ------
        pspad = jnp.concatenate(
            [jnp.zeros((nm, pad2), f32), ps,
             jnp.zeros((nm, Wi - 1 - pad2), f32)], axis=-1)            # (nm, L+Wi-1)
        acc2 = jnp.zeros((channels, L), f32)
        for t in range(Wi):
            acc2 = acc2 + jnp.dot(inf1_w_ref[t], pspad[:, t:t + L],
                                  preferred_element_type=f32)
        hi = jax.nn.relu(acc2 + bias(3, channels))
        influence = (jnp.dot(inf2_w_ref[...], hi, preferred_element_type=f32)
                     + bias(4, nm))                                    # (nm, L)

        # ---- propagate_sparsity: ProductSparsityPropagation (exact != 0 gate) --
        post_influence = influence * (ps != 0.0).astype(f32)

        # ---- final_processor + EarlyChannelLSMRP residual -----------------------
        hf = jax.nn.relu(
            jnp.dot(fp1_w_ref[...], post_influence, preferred_element_type=f32)
            + bias(5, channels))
        out = (jnp.dot(fp2_w_ref[...], hf, preferred_element_type=f32)
               + bias(6, out_size) + spr)                              # (out_size, L)

        # lane-dense store: minor dim is L (full 128-lane vst at demo sizes).
        o_ref[bi] = out


def _pick_batch_tile(B, L, target_m=1024):
    """Sequences per grid step so Bt*L ~ target_m and Bt | B; prefer an even
    grid of >= 2 steps so both v7x TensorCores get equal work."""
    bt = max(1, min(B, target_m // max(L, 1)))
    while B % bt:
        bt -= 1
    while bt > 1 and (B // bt < 2 or (B // bt) % 2):
        bt -= 1
        while B % bt:
            bt -= 1
    return bt


def modular_splice_predictor(x, params, *, cl):
    """x: (B, L, input_size) float32.  Returns (B, L - cl, output_size) float32."""
    B, L, Cin = x.shape
    assert cl % 2 == 0, "cl must be even (cl//2 is cropped from each side)"
    W = params["m1_w"].shape[0]
    Wi, nm, channels = params["inf1_w"].shape
    nm2 = nm - 2
    out_size = params["fp2_w"].shape[-1]
    Cout1 = channels + 2 + out_size

    # Channels-first / sequence-on-lanes layouts (layout plumbing done once in
    # XLA; inside the kernel every vreg is lane-dense along L).
    x_t = jnp.transpose(x, (0, 2, 1)).astype(jnp.float32)              # (B, Cin, L)

    # Fused first-layer conv weight: [motif conv1 | splicepoint | residual].
    f1_w = jnp.concatenate([params["m1_w"], params["sp_w"], params["spr_w"]],
                           axis=-1)                                    # (W, Cin, Cout1)
    f1_w = jnp.transpose(f1_w, (0, 2, 1))                              # (W, Cout1, Cin)
    m2_w = params["m2_w"].T                                            # (nm2, channels)
    inf1_w = jnp.transpose(params["inf1_w"], (0, 2, 1))                # (Wi, channels, nm)
    inf2_w = params["inf2_w"].T                                        # (nm, channels)
    fp1_w = params["fp1_w"].T                                          # (channels, nm)
    fp2_w = params["fp2_w"].T                                          # (out_size, channels)

    # Pack all biases / thresholds as columns of ONE small slab.
    max_c = max(Cout1, channels, nm, nm2, out_size)

    def col(v):
        v = jnp.reshape(v, (-1,))
        return jnp.pad(v, (0, max_c - v.shape[0]))

    bias_pack = jnp.stack(
        [col(jnp.concatenate([params["m1_b"].ravel(), params["sp_b"].ravel(),
                              params["spr_b"].ravel()])),
         col(params["m2_b"]), col(params["thr"]), col(params["inf1_b"]),
         col(params["inf2_b"]), col(params["fp1_b"]), col(params["fp2_b"])],
        axis=1)                                                        # (max_c, 7)

    weights = [f1_w, m2_w, inf1_w, inf2_w, fp1_w, fp2_w, bias_pack]
    weights = [w.astype(jnp.float32) for w in weights]

    Bt = _pick_batch_tile(B, L)
    grid = (B // Bt,)

    # Explicit per-step VMEM budget (double-buffered I/O blocks + weights +
    # padded-block headroom); never below the 32 MiB scoped default, capped
    # well under v7x's 64 MiB physical VMEM.
    est = 4 * 2 * (Bt * Cin * L + Bt * out_size * L)
    est += 4 * 2 * sum(int(w.size) for w in weights)
    est += 4 * 2 * (Bt * Cin * (L + W - 1) + Bt * nm * (L + Wi - 1))
    vmem_limit = int(min(48 << 20, max(32 << 20, 2 * est)))

    def const_spec(a):
        nd = a.ndim
        return pl.BlockSpec(a.shape, lambda b, _nd=nd: (0,) * _nd)

    in_specs = [pl.BlockSpec((Bt, Cin, L), lambda b: (b, 0, 0))]
    in_specs += [const_spec(w) for w in weights]
    out_spec = pl.BlockSpec((Bt, out_size, L), lambda b: (b, 0, 0))
    out_shape = jax.ShapeDtypeStruct((B, out_size, L), jnp.float32)

    full = pl.pallas_call(
        _msp_kernel,
        out_shape=out_shape,
        grid_spec=pltpu.PrefetchScalarGridSpec(
            num_scalar_prefetch=0,
            grid=grid,
            in_specs=in_specs,
            out_specs=out_spec,
        ),
        compiler_params=pltpu.CompilerParams(
            dimension_semantics=("parallel",),
            vmem_limit_bytes=vmem_limit),
    )(x_t, *weights)

    # Back to (B, L, out) and crop cl//2 per side (cheap XLA layout plumbing,
    # keeps the kernel store full-length and lane-dense).
    out = jnp.transpose(full, (0, 2, 1))
    return out[:, cl // 2: L - cl // 2, :]


def init_params(key, *, num_motifs, input_size, output_size, channels, cl,
                motif_width=5):
    """Deterministic synthetic parameters matching the module's shapes."""
    nm2 = num_motifs - 2
    W = motif_width
    Wi = cl + 1  # influence receptive field; cl even -> odd kernel (same pad)
    ks = jax.random.split(key, 8)

    def w(k, shape, scale=0.2):
        return jax.random.normal(k, shape, jnp.float32) * scale

    return dict(
        sp_w=w(ks[0], (W, input_size, 2)),
        sp_b=jnp.zeros((1, 2), jnp.float32),
        spr_w=w(ks[1], (W, input_size, output_size)),
        spr_b=jnp.zeros((1, output_size), jnp.float32),
        m1_w=w(ks[2], (W, input_size, channels)),
        m1_b=jnp.zeros((1, channels), jnp.float32),
        m2_w=w(ks[3], (channels, nm2)),
        m2_b=jnp.zeros((1, nm2), jnp.float32),
        thr=jnp.full((1, nm2), 0.05, jnp.float32),
        inf1_w=w(ks[4], (Wi, num_motifs, channels)),
        inf1_b=jnp.zeros((1, channels), jnp.float32),
        inf2_w=w(ks[5], (channels, num_motifs)),
        inf2_b=jnp.zeros((1, num_motifs), jnp.float32),
        fp1_w=w(ks[6], (num_motifs, channels)),
        fp1_b=jnp.zeros((1, channels), jnp.float32),
        fp2_w=w(ks[7], (channels, output_size)),
        fp2_b=jnp.zeros((1, output_size), jnp.float32),
    )


if __name__ == "__main__":
    key = jax.random.PRNGKey(0)
    B, L, input_size = 2, 128, 4          # L multiple of 128 -> fully lane-dense
    num_motifs, channels, output_size, cl = 8, 16, 3, 16

    k_x, k_p = jax.random.split(key)
    idx = jax.random.randint(k_x, (B, L), 0, input_size)
    x = jax.nn.one_hot(idx, input_size, dtype=jnp.float32)   # (B, L, 4) one-hot DNA

    params = init_params(k_p, num_motifs=num_motifs, input_size=input_size,
                         output_size=output_size, channels=channels, cl=cl)

    out = modular_splice_predictor(x, params, cl=cl)
    out = jax.block_until_ready(out)
    assert out.shape == (B, L - cl, output_size), out.shape
    assert bool(jnp.all(jnp.isfinite(out)))
    print("KERNEL_OK")
</pallas_src>

<mosaic_0001>
module attributes {stable_mosaic.version = 11 : i64} {
  func.func @_msp_kernel(%arg0: i32, %arg1: memref<1x4x128xf32, #tpu.memory_space<vmem>>, %arg2: memref<5x21x4xf32, #tpu.memory_space<vmem>>, %arg3: memref<6x16xf32, #tpu.memory_space<vmem>>, %arg4: memref<17x16x8xf32, #tpu.memory_space<vmem>>, %arg5: memref<8x16xf32, #tpu.memory_space<vmem>>, %arg6: memref<16x8xf32, #tpu.memory_space<vmem>>, %arg7: memref<3x16xf32, #tpu.memory_space<vmem>>, %arg8: memref<21x7xf32, #tpu.memory_space<vmem>>, %arg9: memref<1x3x128xf32, #tpu.memory_space<vmem>>) attributes {dimension_semantics = [#tpu.dimension_semantics<parallel>], iteration_bounds = array<i64: 2>, scalar_prefetch = 0 : i64, scratch_operands = 0 : i64, tpu.core_type = #tpu.core_type<tc>, window_params = [{transform_indices = @transform_0, window_bounds = array<i64: 1, 4, 128>}, {pipeline_mode = #tpu.pipeline_mode<synchronous>, transform_indices = @transform_1, window_bounds = array<i64: 5, 21, 4>}, {pipeline_mode = #tpu.pipeline_mode<synchronous>, transform_indices = @transform_2, window_bounds = array<i64: 6, 16>}, {pipeline_mode = #tpu.pipeline_mode<synchronous>, transform_indices = @transform_3, window_bounds = array<i64: 17, 16, 8>}, {pipeline_mode = #tpu.pipeline_mode<synchronous>, transform_indices = @transform_4, window_bounds = array<i64: 8, 16>}, {pipeline_mode = #tpu.pipeline_mode<synchronous>, transform_indices = @transform_5, window_bounds = array<i64: 16, 8>}, {pipeline_mode = #tpu.pipeline_mode<synchronous>, transform_indices = @transform_6, window_bounds = array<i64: 3, 16>}, {pipeline_mode = #tpu.pipeline_mode<synchronous>, transform_indices = @transform_7, window_bounds = array<i64: 21, 7>}, {transform_indices = @transform_8, window_bounds = array<i64: 1, 3, 128>}]} {
    %c0 = arith.constant 0 : index
    %c0_0 = arith.constant 0 : index
    %c0_1 = arith.constant 0 : index
    %0 = vector.load %arg1[%c0, %c0_0, %c0_1] : memref<1x4x128xf32, #tpu.memory_space<vmem>>, vector<1x4x128xf32>
    %1 = vector.shape_cast %0 : vector<1x4x128xf32> to vector<4x128xf32>
    %cst = arith.constant 0.000000e+00 : f32
    %2 = vector.broadcast %cst : f32 to vector<4x2xf32>
    %cst_2 = arith.constant 0.000000e+00 : f32
    %3 = vector.broadcast %cst_2 : f32 to vector<4x2xf32>
    %4 = tpu.concatenate %2, %1, %3 in 1 : vector<4x2xf32>, vector<4x128xf32>, vector<4x2xf32> -> vector<4x132xf32>
    %cst_3 = arith.constant 0.000000e+00 : f32
    %5 = vector.broadcast %cst_3 : f32 to vector<21x128xf32>
    %c0_4 = arith.constant 0 : index
    %c0_5 = arith.constant 0 : index
    %c0_6 = arith.constant 0 : index
    %6 = vector.load %arg2[%c0_4, %c0_5, %c0_6] : memref<5x21x4xf32, #tpu.memory_space<vmem>>, vector<1x21x4xf32>
    %7 = vector.shape_cast %6 : vector<1x21x4xf32> to vector<21x4xf32>
    %8 = vector.extract_strided_slice %4 {offsets = [0, 0], sizes = [4, 128], strides = [1, 1]} : vector<4x132xf32> to vector<4x128xf32>
    %cst_7 = arith.constant dense<0.000000e+00> : vector<21x128xf32>
    %9 = tpu.matmul %7, %8, %cst_7 {dimension_numbers = #tpu.dot_dimension_numbers<[1], [0], [0], [1], [0, 0, 1, 1], [], []>} : vector<21x4xf32>, vector<4x128xf32>, vector<21x128xf32> -> vector<21x128xf32>
    %10 = arith.addf %5, %9 : vector<21x128xf32>
    %c1 = arith.constant 1 : index
    %c0_8 = arith.constant 0 : index
    %c0_9 = arith.constant 0 : index
    %11 = vector.load %arg2[%c1, %c0_8, %c0_9] : memref<5x21x4xf32, #tpu.memory_space<vmem>>, vector<1x21x4xf32>
    %12 = vector.shape_cast %11 : vector<1x21x4xf32> to vector<21x4xf32>
    %13 = vector.extract_strided_slice %4 {offsets = [0, 1], sizes = [4, 128], strides = [1, 1]} : vector<4x132xf32> to vector<4x128xf32>
    %cst_10 = arith.constant dense<0.000000e+00> : vector<21x128xf32>
    %14 = tpu.matmul %12, %13, %cst_10 {dimension_numbers = #tpu.dot_dimension_numbers<[1], [0], [0], [1], [0, 0, 1, 1], [], []>} : vector<21x4xf32>, vector<4x128xf32>, vector<21x128xf32> -> vector<21x128xf32>
    %15 = arith.addf %10, %14 : vector<21x128xf32>
    %c2 = arith.constant 2 : index
    %c0_11 = arith.constant 0 : index
    %c0_12 = arith.constant 0 : index
    %16 = vector.load %arg2[%c2, %c0_11, %c0_12] : memref<5x21x4xf32, #tpu.memory_space<vmem>>, vector<1x21x4xf32>
    %17 = vector.shape_cast %16 : vector<1x21x4xf32> to vector<21x4xf32>
    %18 = vector.extract_strided_slice %4 {offsets = [0, 2], sizes = [4, 128], strides = [1, 1]} : vector<4x132xf32> to vector<4x128xf32>
    %cst_13 = arith.constant dense<0.000000e+00> : vector<21x128xf32>
    %19 = tpu.matmul %17, %18, %cst_13 {dimension_numbers = #tpu.dot_dimension_numbers<[1], [0], [0], [1], [0, 0, 1, 1], [], []>} : vector<21x4xf32>, vector<4x128xf32>, vector<21x128xf32> -> vector<21x128xf32>
    %20 = arith.addf %15, %19 : vector<21x128xf32>
    %c3 = arith.constant 3 : index
    %c0_14 = arith.constant 0 : index
    %c0_15 = arith.constant 0 : index
    %21 = vector.load %arg2[%c3, %c0_14, %c0_15] : memref<5x21x4xf32, #tpu.memory_space<vmem>>, vector<1x21x4xf32>
    %22 = vector.shape_cast %21 : vector<1x21x4xf32> to vector<21x4xf32>
    %23 = vector.extract_strided_slice %4 {offsets = [0, 3], sizes = [4, 128], strides = [1, 1]} : vector<4x132xf32> to vector<4x128xf32>
    %cst_16 = arith.constant dense<0.000000e+00> : vector<21x128xf32>
    %24 = tpu.matmul %22, %23, %cst_16 {dimension_numbers = #tpu.dot_dimension_numbers<[1], [0], [0], [1], [0, 0, 1, 1], [], []>} : vector<21x4xf32>, vector<4x128xf32>, vector<21x128xf32> -> vector<21x128xf32>
    %25 = arith.addf %20, %24 : vector<21x128xf32>
    %c4 = arith.constant 4 : index
    %c0_17 = arith.constant 0 : index
    %c0_18 = arith.constant 0 : index
    %26 = vector.load %arg2[%c4, %c0_17, %c0_18] : memref<5x21x4xf32, #tpu.memory_space<vmem>>, vector<1x21x4xf32>
    %27 = vector.shape_cast %26 : vector<1x21x4xf32> to vector<21x4xf32>
    %28 = vector.extract_strided_slice %4 {offsets = [0, 4], sizes = [4, 128], strides = [1, 1]} : vector<4x132xf32> to vector<4x128xf32>
    %cst_19 = arith.constant dense<0.000000e+00> : vector<21x128xf32>
    %29 = tpu.matmul %27, %28, %cst_19 {dimension_numbers = #tpu.dot_dimension_numbers<[1], [0], [0], [1], [0, 0, 1, 1], [], []>} : vector<21x4xf32>, vector<4x128xf32>, vector<21x128xf32> -> vector<21x128xf32>
    %30 = arith.addf %25, %29 : vector<21x128xf32>
    %c0_20 = arith.constant 0 : index
    %c0_21 = arith.constant 0 : index
    %31 = vector.load %arg8[%c0_20, %c0_21] : memref<21x7xf32, #tpu.memory_space<vmem>>, vector<21x1xf32>
    %32 = vector.broadcast %31 : vector<21x1xf32> to vector<21x128xf32>
    %33 = arith.addf %30, %32 : vector<21x128xf32>
    %34 = vector.extract_strided_slice %33 {offsets = [0, 0], sizes = [16, 128], strides = [1, 1]} : vector<21x128xf32> to vector<16x128xf32>
    %cst_22 = arith.constant 0.000000e+00 : f32
    %35 = vector.broadcast %cst_22 : f32 to vector<16x128xf32>
    %36 = arith.maximumf %34, %35 : vector<16x128xf32>
    %37 = vector.extract_strided_slice %33 {offsets = [16, 0], sizes = [2, 128], strides = [1, 1]} : vector<21x128xf32> to vector<2x128xf32>
    %38 = vector.extract_strided_slice %33 {offsets = [18, 0], sizes = [3, 128], strides = [1, 1]} : vector<21x128xf32> to vector<3x128xf32>
    %cst_23 = arith.constant dense<0xFF800000> : vector<128xf32>
    %39 = vector.multi_reduction <maximumf>, %38, %cst_23 [0] : vector<3x128xf32> to vector<128xf32>
    %40 = vector.shape_cast %39 : vector<128xf32> to vector<1x128xf32>
    %41 = vector.broadcast %40 : vector<1x128xf32> to vector<3x128xf32>
    %42 = arith.subf %38, %41 : vector<3x128xf32>
    %43 = math.exp %42 : vector<3x128xf32>
    %cst_24 = arith.constant dense<0.000000e+00> : vector<128xf32>
    %44 = vector.multi_reduction <add>, %43, %cst_24 [0] : vector<3x128xf32> to vector<128xf32>
    %45 = vector.shape_cast %44 : vector<128xf32> to vector<1x128xf32>
    %46 = math.log %45 : vector<1x128xf32>
    %47 = vector.broadcast %46 : vector<1x128xf32> to vector<3x128xf32>
    %48 = arith.subf %42, %47 : vector<3x128xf32>
    %c0_25 = arith.constant 0 : index
    %c0_26 = arith.constant 0 : index
    %49 = vector.load %arg3[%c0_25, %c0_26] : memref<6x16xf32, #tpu.memory_space<vmem>>, vector<6x16xf32>
    %cst_27 = arith.constant dense<0.000000e+00> : vector<6x128xf32>
    %50 = tpu.matmul %49, %36, %cst_27 {dimension_numbers = #tpu.dot_dimension_numbers<[1], [0], [0], [1], [0, 0, 1, 1], [], []>} : vector<6x16xf32>, vector<16x128xf32>, vector<6x128xf32> -> vector<6x128xf32>
    %c0_28 = arith.constant 0 : index
    %c1_29 = arith.constant 1 : index
    %51 = vector.load %arg8[%c0_28, %c1_29] : memref<21x7xf32, #tpu.memory_space<vmem>>, vector<6x1xf32>
    %52 = vector.broadcast %51 : vector<6x1xf32> to vector<6x128xf32>
    %53 = arith.addf %50, %52 : vector<6x128xf32>
    %cst_30 = arith.constant 0.000000e+00 : f32
    %54 = vector.broadcast %cst_30 : f32 to vector<6x128xf32>
    %55 = arith.maximumf %53, %54 : vector<6x128xf32>
    %c0_31 = arith.constant 0 : index
    %c2_32 = arith.constant 2 : index
    %56 = vector.load %arg8[%c0_31, %c2_32] : memref<21x7xf32, #tpu.memory_space<vmem>>, vector<6x1xf32>
    %57 = vector.broadcast %56 : vector<6x1xf32> to vector<6x128xf32>
    %58 = arith.cmpf ogt, %55, %57 : vector<6x128xf32>
    %cst_33 = arith.constant 0.000000e+00 : f32
    %59 = vector.broadcast %cst_33 : f32 to vector<6x128xf32>
    %60 = arith.select %58, %55, %59 : vector<6x128xi1>, vector<6x128xf32>
    %61 = tpu.concatenate %60, %37 in 0 : vector<6x128xf32>, vector<2x128xf32> -> vector<8x128xf32>
    %cst_34 = arith.constant 0.000000e+00 : f32
    %62 = vector.broadcast %cst_34 : f32 to vector<8x8xf32>
    %cst_35 = arith.constant 0.000000e+00 : f32
    %63 = vector.broadcast %cst_35 : f32 to vector<8x8xf32>
    %64 = tpu.concatenate %62, %61, %63 in 1 : vector<8x8xf32>, vector<8x128xf32>, vector<8x8xf32> -> vector<8x144xf32>
    %cst_36 = arith.constant 0.000000e+00 : f32
    %65 = vector.broadcast %cst_36 : f32 to vector<16x128xf32>
    %c0_37 = arith.constant 0 : index
    %c0_38 = arith.constant 0 : index
    %c0_39 = arith.constant 0 : index
    %66 = vector.load %arg4[%c0_37, %c0_38, %c0_39] : memref<17x16x8xf32, #tpu.memory_space<vmem>>, vector<1x16x8xf32>
    %67 = vector.shape_cast %66 : vector<1x16x8xf32> to vector<16x8xf32>
    %68 = vector.extract_strided_slice %64 {offsets = [0, 0], sizes = [8, 128], strides = [1, 1]} : vector<8x144xf32> to vector<8x128xf32>
    %cst_40 = arith.constant dense<0.000000e+00> : vector<16x128xf32>
    %69 = tpu.matmul %67, %68, %cst_40 {dimension_numbers = #tpu.dot_dimension_numbers<[1], [0], [0], [1], [0, 0, 1, 1], [], []>} : vector<16x8xf32>, vector<8x128xf32>, vector<16x128xf32> -> vector<16x128xf32>
    %70 = arith.addf %65, %69 : vector<16x128xf32>
    %c1_41 = arith.constant 1 : index
    %c0_42 = arith.constant 0 : index
    %c0_43 = arith.constant 0 : index
    %71 = vector.load %arg4[%c1_41, %c0_42, %c0_43] : memref<17x16x8xf32, #tpu.memory_space<vmem>>, vector<1x16x8xf32>
    %72 = vector.shape_cast %71 : vector<1x16x8xf32> to vector<16x8xf32>
    %73 = vector.extract_strided_slice %64 {offsets = [0, 1], sizes = [8, 128], strides = [1, 1]} : vector<8x144xf32> to vector<8x128xf32>
    %cst_44 = arith.constant dense<0.000000e+00> : vector<16x128xf32>
    %74 = tpu.matmul %72, %73, %cst_44 {dimension_numbers = #tpu.dot_dimension_numbers<[1], [0], [0], [1], [0, 0, 1, 1], [], []>} : vector<16x8xf32>, vector<8x128xf32>, vector<16x128xf32> -> vector<16x128xf32>
    %75 = arith.addf %70, %74 : vector<16x128xf32>
    %c2_45 = arith.constant 2 : index
    %c0_46 = arith.constant 0 : index
    %c0_47 = arith.constant 0 : index
    %76 = vector.load %arg4[%c2_45, %c0_46, %c0_47] : memref<17x16x8xf32, #tpu.memory_space<vmem>>, vector<1x16x8xf32>
    %77 = vector.shape_cast %76 : vector<1x16x8xf32> to vector<16x8xf32>
    %78 = vector.extract_strided_slice %64 {offsets = [0, 2], sizes = [8, 128], strides = [1, 1]} : vector<8x144xf32> to vector<8x128xf32>
    %cst_48 = arith.constant dense<0.000000e+00> : vector<16x128xf32>
    %79 = tpu.matmul %77, %78, %cst_48 {dimension_numbers = #tpu.dot_dimension_numbers<[1], [0], [0], [1], [0, 0, 1, 1], [], []>} : vector<16x8xf32>, vector<8x128xf32>, vector<16x128xf32> -> vector<16x128xf32>
    %80 = arith.addf %75, %79 : vector<16x128xf32>
    %c3_49 = arith.constant 3 : index
    %c0_50 = arith.constant 0 : index
    %c0_51 = arith.constant 0 : index
    %81 = vector.load %arg4[%c3_49, %c0_50, %c0_51] : memref<17x16x8xf32, #tpu.memory_space<vmem>>, vector<1x16x8xf32>
    %82 = vector.shape_cast %81 : vector<1x16x8xf32> to vector<16x8xf32>
    %83 = vector.extract_strided_slice %64 {offsets = [0, 3], sizes = [8, 128], strides = [1, 1]} : vector<8x144xf32> to vector<8x128xf32>
    %cst_52 = arith.constant dense<0.000000e+00> : vector<16x128xf32>
    %84 = tpu.matmul %82, %83, %cst_52 {dimension_numbers = #tpu.dot_dimension_numbers<[1], [0], [0], [1], [0, 0, 1, 1], [], []>} : vector<16x8xf32>, vector<8x128xf32>, vector<16x128xf32> -> vector<16x128xf32>
    %85 = arith.addf %80, %84 : vector<16x128xf32>
    %c4_53 = arith.constant 4 : index
    %c0_54 = arith.constant 0 : index
    %c0_55 = arith.constant 0 : index
    %86 = vector.load %arg4[%c4_53, %c0_54, %c0_55] : memref<17x16x8xf32, #tpu.memory_space<vmem>>, vector<1x16x8xf32>
    %87 = vector.shape_cast %86 : vector<1x16x8xf32> to vector<16x8xf32>
    %88 = vector.extract_strided_slice %64 {offsets = [0, 4], sizes = [8, 128], strides = [1, 1]} : vector<8x144xf32> to vector<8x128xf32>
    %cst_56 = arith.constant dense<0.000000e+00> : vector<16x128xf32>
    %89 = tpu.matmul %87, %88, %cst_56 {dimension_numbers = #tpu.dot_dimension_numbers<[1], [0], [0], [1], [0, 0, 1, 1], [], []>} : vector<16x8xf32>, vector<8x128xf32>, vector<16x128xf32> -> vector<16x128xf32>
    %90 = arith.addf %85, %89 : vector<16x128xf32>
    %c5 = arith.constant 5 : index
    %c0_57 = arith.constant 0 : index
    %c0_58 = arith.constant 0 : index
    %91 = vector.load %arg4[%c5, %c0_57, %c0_58] : memref<17x16x8xf32, #tpu.memory_space<vmem>>, vector<1x16x8xf32>
    %92 = vector.shape_cast %91 : vector<1x16x8xf32> to vector<16x8xf32>
    %93 = vector.extract_strided_slice %64 {offsets = [0, 5], sizes = [8, 128], strides = [1, 1]} : vector<8x144xf32> to vector<8x128xf32>
    %cst_59 = arith.constant dense<0.000000e+00> : vector<16x128xf32>
    %94 = tpu.matmul %92, %93, %cst_59 {dimension_numbers = #tpu.dot_dimension_numbers<[1], [0], [0], [1], [0, 0, 1, 1], [], []>} : vector<16x8xf32>, vector<8x128xf32>, vector<16x128xf32> -> vector<16x128xf32>
    %95 = arith.addf %90, %94 : vector<16x128xf32>
    %c6 = arith.constant 6 : index
    %c0_60 = arith.constant 0 : index
    %c0_61 = arith.constant 0 : index
    %96 = vector.load %arg4[%c6, %c0_60, %c0_61] : memref<17x16x8xf32, #tpu.memory_space<vmem>>, vector<1x16x8xf32>
    %97 = vector.shape_cast %96 : vector<1x16x8xf32> to vector<16x8xf32>
    %98 = vector.extract_strided_slice %64 {offsets = [0, 6], sizes = [8, 128], strides = [1, 1]} : vector<8x144xf32> to vector<8x128xf32>
    %cst_62 = arith.constant dense<0.000000e+00> : vector<16x128xf32>
    %99 = tpu.matmul %97, %98, %cst_62 {dimension_numbers = #tpu.dot_dimension_numbers<[1], [0], [0], [1], [0, 0, 1, 1], [], []>} : vector<16x8xf32>, vector<8x128xf32>, vector<16x128xf32> -> vector<16x128xf32>
    %100 = arith.addf %95, %99 : vector<16x128xf32>
    %c7 = arith.constant 7 : index
    %c0_63 = arith.constant 0 : index
    %c0_64 = arith.constant 0 : index
    %101 = vector.load %arg4[%c7, %c0_63, %c0_64] : memref<17x16x8xf32, #tpu.memory_space<vmem>>, vector<1x16x8xf32>
    %102 = vector.shape_cast %101 : vector<1x16x8xf32> to vector<16x8xf32>
    %103 = vector.extract_strided_slice %64 {offsets = [0, 7], sizes = [8, 128], strides = [1, 1]} : vector<8x144xf32> to vector<8x128xf32>
    %cst_65 = arith.constant dense<0.000000e+00> : vector<16x128xf32>
    %104 = tpu.matmul %102, %103, %cst_65 {dimension_numbers = #tpu.dot_dimension_numbers<[1], [0], [0], [1], [0, 0, 1, 1], [], []>} : vector<16x8xf32>, vector<8x128xf32>, vector<16x128xf32> -> vector<16x128xf32>
    %105 = arith.addf %100, %104 : vector<16x128xf32>
    %c8 = arith.constant 8 : index
    %c0_66 = arith.constant 0 : index
    %c0_67 = arith.constant 0 : index
    %106 = vector.load %arg4[%c8, %c0_66, %c0_67] : memref<17x16x8xf32, #tpu.memory_space<vmem>>, vector<1x16x8xf32>
    %107 = vector.shape_cast %106 : vector<1x16x8xf32> to vector<16x8xf32>
    %108 = vector.extract_strided_slice %64 {offsets = [0, 8], sizes = [8, 128], strides = [1, 1]} : vector<8x144xf32> to vector<8x128xf32>
    %cst_68 = arith.constant dense<0.000000e+00> : vector<16x128xf32>
    %109 = tpu.matmul %107, %108, %cst_68 {dimension_numbers = #tpu.dot_dimension_numbers<[1], [0], [0], [1], [0, 0, 1, 1], [], []>} : vector<16x8xf32>, vector<8x128xf32>, vector<16x128xf32> -> vector<16x128xf32>
    %110 = arith.addf %105, %109 : vector<16x128xf32>
    %c9 = arith.constant 9 : index
    %c0_69 = arith.constant 0 : index
    %c0_70 = arith.constant 0 : index
    %111 = vector.load %arg4[%c9, %c0_69, %c0_70] : memref<17x16x8xf32, #tpu.memory_space<vmem>>, vector<1x16x8xf32>
    %112 = vector.shape_cast %111 : vector<1x16x8xf32> to vector<16x8xf32>
    %113 = vector.extract_strided_slice %64 {offsets = [0, 9], sizes = [8, 128], strides = [1, 1]} : vector<8x144xf32> to vector<8x128xf32>
    %cst_71 = arith.constant dense<0.000000e+00> : vector<16x128xf32>
    %114 = tpu.matmul %112, %113, %cst_71 {dimension_numbers = #tpu.dot_dimension_numbers<[1], [0], [0], [1], [0, 0, 1, 1], [], []>} : vector<16x8xf32>, vector<8x128xf32>, vector<16x128xf32> -> vector<16x128xf32>
    %115 = arith.addf %110, %114 : vector<16x128xf32>
    %c10 = arith.constant 10 : index
    %c0_72 = arith.constant 0 : index
    %c0_73 = arith.constant 0 : index
    %116 = vector.load %arg4[%c10, %c0_72, %c0_73] : memref<17x16x8xf32, #tpu.memory_space<vmem>>, vector<1x16x8xf32>
    %117 = vector.shape_cast %116 : vector<1x16x8xf32> to vector<16x8xf32>
    %118 = vector.extract_strided_slice %64 {offsets = [0, 10], sizes = [8, 128], strides = [1, 1]} : vector<8x144xf32> to vector<8x128xf32>
    %cst_74 = arith.constant dense<0.000000e+00> : vector<16x128xf32>
    %119 = tpu.matmul %117, %118, %cst_74 {dimension_numbers = #tpu.dot_dimension_numbers<[1], [0], [0], [1], [0, 0, 1, 1], [], []>} : vector<16x8xf32>, vector<8x128xf32>, vector<16x128xf32> -> vector<16x128xf32>
    %120 = arith.addf %115, %119 : vector<16x128xf32>
    %c11 = arith.constant 11 : index
    %c0_75 = arith.constant 0 : index
    %c0_76 = arith.constant 0 : index
    %121 = vector.load %arg4[%c11, %c0_75, %c0_76] : memref<17x16x8xf32, #tpu.memory_space<vmem>>, vector<1x16x8xf32>
    %122 = vector.shape_cast %121 : vector<1x16x8xf32> to vector<16x8xf32>
    %123 = vector.extract_strided_slice %64 {offsets = [0, 11], sizes = [8, 128], strides = [1, 1]} : vector<8x144xf32> to vector<8x128xf32>
    %cst_77 = arith.constant dense<0.000000e+00> : vector<16x128xf32>
    %124 = tpu.matmul %122, %123, %cst_77 {dimension_numbers = #tpu.dot_dimension_numbers<[1], [0], [0], [1], [0, 0, 1, 1], [], []>} : vector<16x8xf32>, vector<8x128xf32>, vector<16x128xf32> -> vector<16x128xf32>
    %125 = arith.addf %120, %124 : vector<16x128xf32>
    %c12 = arith.constant 12 : index
    %c0_78 = arith.constant 0 : index
    %c0_79 = arith.constant 0 : index
    %126 = vector.load %arg4[%c12, %c0_78, %c0_79] : memref<17x16x8xf32, #tpu.memory_space<vmem>>, vector<1x16x8xf32>
    %127 = vector.shape_cast %126 : vector<1x16x8xf32> to vector<16x8xf32>
    %128 = vector.extract_strided_slice %64 {offsets = [0, 12], sizes = [8, 128], strides = [1, 1]} : vector<8x144xf32> to vector<8x128xf32>
    %cst_80 = arith.constant dense<0.000000e+00> : vector<16x128xf32>
    %129 = tpu.matmul %127, %128, %cst_80 {dimension_numbers = #tpu.dot_dimension_numbers<[1], [0], [0], [1], [0, 0, 1, 1], [], []>} : vector<16x8xf32>, vector<8x128xf32>, vector<16x128xf32> -> vector<16x128xf32>
    %130 = arith.addf %125, %129 : vector<16x128xf32>
    %c13 = arith.constant 13 : index
    %c0_81 = arith.constant 0 : index
    %c0_82 = arith.constant 0 : index
    %131 = vector.load %arg4[%c13, %c0_81, %c0_82] : memref<17x16x8xf32, #tpu.memory_space<vmem>>, vector<1x16x8xf32>
    %132 = vector.shape_cast %131 : vector<1x16x8xf32> to vector<16x8xf32>
    %133 = vector.extract_strided_slice %64 {offsets = [0, 13], sizes = [8, 128], strides = [1, 1]} : vector<8x144xf32> to vector<8x128xf32>
    %cst_83 = arith.constant dense<0.000000e+00> : vector<16x128xf32>
    %134 = tpu.matmul %132, %133, %cst_83 {dimension_numbers = #tpu.dot_dimension_numbers<[1], [0], [0], [1], [0, 0, 1, 1], [], []>} : vector<16x8xf32>, vector<8x128xf32>, vector<16x128xf32> -> vector<16x128xf32>
    %135 = arith.addf %130, %134 : vector<16x128xf32>
    %c14 = arith.constant 14 : index
    %c0_84 = arith.constant 0 : index
    %c0_85 = arith.constant 0 : index
    %136 = vector.load %arg4[%c14, %c0_84, %c0_85] : memref<17x16x8xf32, #tpu.memory_space<vmem>>, vector<1x16x8xf32>
    %137 = vector.shape_cast %136 : vector<1x16x8xf32> to vector<16x8xf32>
    %138 = vector.extract_strided_slice %64 {offsets = [0, 14], sizes = [8, 128], strides = [1, 1]} : vector<8x144xf32> to vector<8x128xf32>
    %cst_86 = arith.constant dense<0.000000e+00> : vector<16x128xf32>
    %139 = tpu.matmul %137, %138, %cst_86 {dimension_numbers = #tpu.dot_dimension_numbers<[1], [0], [0], [1], [0, 0, 1, 1], [], []>} : vector<16x8xf32>, vector<8x128xf32>, vector<16x128xf32> -> vector<16x128xf32>
    %140 = arith.addf %135, %139 : vector<16x128xf32>
    %c15 = arith.constant 15 : index
    %c0_87 = arith.constant 0 : index
    %c0_88 = arith.constant 0 : index
    %141 = vector.load %arg4[%c15, %c0_87, %c0_88] : memref<17x16x8xf32, #tpu.memory_space<vmem>>, vector<1x16x8xf32>
    %142 = vector.shape_cast %141 : vector<1x16x8xf32> to vector<16x8xf32>
    %143 = vector.extract_strided_slice %64 {offsets = [0, 15], sizes = [8, 128], strides = [1, 1]} : vector<8x144xf32> to vector<8x128xf32>
    %cst_89 = arith.constant dense<0.000000e+00> : vector<16x128xf32>
    %144 = tpu.matmul %142, %143, %cst_89 {dimension_numbers = #tpu.dot_dimension_numbers<[1], [0], [0], [1], [0, 0, 1, 1], [], []>} : vector<16x8xf32>, vector<8x128xf32>, vector<16x128xf32> -> vector<16x128xf32>
    %145 = arith.addf %140, %144 : vector<16x128xf32>
    %c16 = arith.constant 16 : index
    %c0_90 = arith.constant 0 : index
    %c0_91 = arith.constant 0 : index
    %146 = vector.load %arg4[%c16, %c0_90, %c0_91] : memref<17x16x8xf32, #tpu.memory_space<vmem>>, vector<1x16x8xf32>
    %147 = vector.shape_cast %146 : vector<1x16x8xf32> to vector<16x8xf32>
    %148 = vector.extract_strided_slice %64 {offsets = [0, 16], sizes = [8, 128], strides = [1, 1]} : vector<8x144xf32> to vector<8x128xf32>
    %cst_92 = arith.constant dense<0.000000e+00> : vector<16x128xf32>
    %149 = tpu.matmul %147, %148, %cst_92 {dimension_numbers = #tpu.dot_dimension_numbers<[1], [0], [0], [1], [0, 0, 1, 1], [], []>} : vector<16x8xf32>, vector<8x128xf32>, vector<16x128xf32> -> vector<16x128xf32>
    %150 = arith.addf %145, %149 : vector<16x128xf32>
    %c0_93 = arith.constant 0 : index
    %c3_94 = arith.constant 3 : index
    %151 = vector.load %arg8[%c0_93, %c3_94] : memref<21x7xf32, #tpu.memory_space<vmem>>, vector<16x1xf32>
    %152 = vector.broadcast %151 : vector<16x1xf32> to vector<16x128xf32>
    %153 = arith.addf %150, %152 : vector<16x128xf32>
    %cst_95 = arith.constant 0.000000e+00 : f32
    %154 = vector.broadcast %cst_95 : f32 to vector<16x128xf32>
    %155 = arith.maximumf %153, %154 : vector<16x128xf32>
    %c0_96 = arith.constant 0 : index
    %c0_97 = arith.constant 0 : index
    %156 = vector.load %arg5[%c0_96, %c0_97] : memref<8x16xf32, #tpu.memory_space<vmem>>, vector<8x16xf32>
    %cst_98 = arith.constant dense<0.000000e+00> : vector<8x128xf32>
    %157 = tpu.matmul %156, %155, %cst_98 {dimension_numbers = #tpu.dot_dimension_numbers<[1], [0], [0], [1], [0, 0, 1, 1], [], []>} : vector<8x16xf32>, vector<16x128xf32>, vector<8x128xf32> -> vector<8x128xf32>
    %c0_99 = arith.constant 0 : index
    %c4_100 = arith.constant 4 : index
    %158 = vector.load %arg8[%c0_99, %c4_100] : memref<21x7xf32, #tpu.memory_space<vmem>>, vector<8x1xf32>
    %159 = vector.broadcast %158 : vector<8x1xf32> to vector<8x128xf32>
    %160 = arith.addf %157, %159 : vector<8x128xf32>
    %cst_101 = arith.constant 0.000000e+00 : f32
    %161 = vector.broadcast %cst_101 : f32 to vector<8x128xf32>
    %162 = arith.cmpf one, %61, %161 : vector<8x128xf32>
    %163 = arith.extui %162 : vector<8x128xi1> to vector<8x128xi32>
    %164 = arith.sitofp %163 : vector<8x128xi32> to vector<8x128xf32>
    %165 = arith.mulf %160, %164 : vector<8x128xf32>
    %c0_102 = arith.constant 0 : index
    %c0_103 = arith.constant 0 : index
    %166 = vector.load %arg6[%c0_102, %c0_103] : memref<16x8xf32, #tpu.memory_space<vmem>>, vector<16x8xf32>
    %cst_104 = arith.constant dense<0.000000e+00> : vector<16x128xf32>
    %167 = tpu.matmul %166, %165, %cst_104 {dimension_numbers = #tpu.dot_dimension_numbers<[1], [0], [0], [1], [0, 0, 1, 1], [], []>} : vector<16x8xf32>, vector<8x128xf32>, vector<16x128xf32> -> vector<16x128xf32>
    %c0_105 = arith.constant 0 : index
    %c5_106 = arith.constant 5 : index
    %168 = vector.load %arg8[%c0_105, %c5_106] : memref<21x7xf32, #tpu.memory_space<vmem>>, vector<16x1xf32>
    %169 = vector.broadcast %168 : vector<16x1xf32> to vector<16x128xf32>
    %170 = arith.addf %167, %169 : vector<16x128xf32>
    %cst_107 = arith.constant 0.000000e+00 : f32
    %171 = vector.broadcast %cst_107 : f32 to vector<16x128xf32>
    %172 = arith.maximumf %170, %171 : vector<16x128xf32>
    %c0_108 = arith.constant 0 : index
    %c0_109 = arith.constant 0 : index
    %173 = vector.load %arg7[%c0_108, %c0_109] : memref<3x16xf32, #tpu.memory_space<vmem>>, vector<3x16xf32>
    %cst_110 = arith.constant dense<0.000000e+00> : vector<3x128xf32>
    %174 = tpu.matmul %173, %172, %cst_110 {dimension_numbers = #tpu.dot_dimension_numbers<[1], [0], [0], [1], [0, 0, 1, 1], [], []>} : vector<3x16xf32>, vector<16x128xf32>, vector<3x128xf32> -> vector<3x128xf32>
    %c0_111 = arith.constant 0 : index
    %c6_112 = arith.constant 6 : index
    %175 = vector.load %arg8[%c0_111, %c6_112] : memref<21x7xf32, #tpu.memory_space<vmem>>, vector<3x1xf32>
    %176 = vector.broadcast %175 : vector<3x1xf32> to vector<3x128xf32>
    %177 = arith.addf %174, %176 : vector<3x128xf32>
    %178 = arith.addf %177, %48 : vector<3x128xf32>
    %c0_113 = arith.constant 0 : index
    %c0_114 = arith.constant 0 : index
    %c0_115 = arith.constant 0 : index
    %179 = vector.load %arg9[%c0_113, %c0_114, %c0_115] : memref<1x3x128xf32, #tpu.memory_space<vmem>>, vector<1x3x128xf32>
    %180 = vector.shape_cast %179 : vector<1x3x128xf32> to vector<3x128xf32>
    %181 = vector.shape_cast %178 : vector<3x128xf32> to vector<1x3x128xf32>
    tpu.vector_store %arg9[%c0_113, %c0_114, %c0_115], %181 {strides = array<i32>} : memref<1x3x128xf32, #tpu.memory_space<vmem>>, vector<1x3x128xf32>,
    return
  }
  func.func @transform_0(%arg0: i32) -> (i32, i32, i32) {
    %c0_i32 = arith.constant 0 : i32
    %c0_i32_0 = arith.constant 0 : i32
    %c0_i32_1 = arith.constant 0 : i32
    return %arg0, %c0_i32, %c0_i32_0 : i32, i32, i32
  }
  func.func @transform_1(%arg0: i32) -> (i32, i32, i32) {
    %c0_i32 = arith.constant 0 : i32
    %c0_i32_0 = arith.constant 0 : i32
    %c0_i32_1 = arith.constant 0 : i32
    %c0_i32_2 = arith.constant 0 : i32
    return %c0_i32, %c0_i32_0, %c0_i32_1 : i32, i32, i32
  }
  func.func @transform_2(%arg0: i32) -> (i32, i32) {
    %c0_i32 = arith.constant 0 : i32
    %c0_i32_0 = arith.constant 0 : i32
    %c0_i32_1 = arith.constant 0 : i32
    return %c0_i32, %c0_i32_0 : i32, i32
  }
  func.func @transform_3(%arg0: i32) -> (i32, i32, i32) {
    %c0_i32 = arith.constant 0 : i32
    %c0_i32_0 = arith.constant 0 : i32
    %c0_i32_1 = arith.constant 0 : i32
    %c0_i32_2 = arith.constant 0 : i32
    return %c0_i32, %c0_i32_0, %c0_i32_1 : i32, i32, i32
  }
  func.func @transform_4(%arg0: i32) -> (i32, i32) {
    %c0_i32 = arith.constant 0 : i32
    %c0_i32_0 = arith.constant 0 : i32
    %c0_i32_1 = arith.constant 0 : i32
    return %c0_i32, %c0_i32_0 : i32, i32
  }
  func.func @transform_5(%arg0: i32) -> (i32, i32) {
    %c0_i32 = arith.constant 0 : i32
    %c0_i32_0 = arith.constant 0 : i32
    %c0_i32_1 = arith.constant 0 : i32
    return %c0_i32, %c0_i32_0 : i32, i32
  }
  func.func @transform_6(%arg0: i32) -> (i32, i32) {
    %c0_i32 = arith.constant 0 : i32
    %c0_i32_0 = arith.constant 0 : i32
    %c0_i32_1 = arith.constant 0 : i32
    return %c0_i32, %c0_i32_0 : i32, i32
  }
  func.func @transform_7(%arg0: i32) -> (i32, i32) {
    %c0_i32 = arith.constant 0 : i32
    %c0_i32_0 = arith.constant 0 : i32
    %c0_i32_1 = arith.constant 0 : i32
    return %c0_i32, %c0_i32_0 : i32, i32
  }
  func.func @transform_8(%arg0: i32) -> (i32, i32, i32) {
    %c0_i32 = arith.constant 0 : i32
    %c0_i32_0 = arith.constant 0 : i32
    %c0_i32_1 = arith.constant 0 : i32
    return %arg0, %c0_i32, %c0_i32_0 : i32, i32, i32
  }
}

</mosaic_0001>

<llo_original>
// kernel: tpu_custom_call.1
$region0: #{tpu_custom_call.1}
  #allocation0 [shape = 'u32[]', space=smem, size = 0x4, offset = 0x4, fixed_abs, tag = 'smem constant byte address 0x4 - core index']
  #allocation1 [shape = 'u32[72,128]{1,0:T(1,128)}', space=vmem, size = 0x9000, scoped, tag = 'internal scratch']
  %s0 = inlined_call_operand.vmem [shape: f32[2,4,128], index: 0, kind: input, shape index: {}]
  %s1 = inlined_call_operand.vmem [shape: f32[5,21,4], index: 1, kind: input, shape index: {}]
  %s2 = inlined_call_operand.vmem [shape: f32[6,16], index: 2, kind: input, shape index: {}]
  %s3 = inlined_call_operand.vmem [shape: f32[17,16,8], index: 3, kind: input, shape index: {}]
  %s4 = inlined_call_operand.vmem [shape: f32[8,16], index: 4, kind: input, shape index: {}]
  %s5 = inlined_call_operand.vmem [shape: f32[16,8], index: 5, kind: input, shape index: {}]
  %s6 = inlined_call_operand.vmem [shape: f32[3,16], index: 6, kind: input, shape index: {}]
  %s7 = inlined_call_operand.vmem [shape: f32[21,7], index: 7, kind: input, shape index: {}]
  %s8 = inlined_call_operand.vmem [shape: f32[2,3,128], index: 8, kind: output, shape index: {}]
  %s9 = sld [smem:[#allocation0]]
  $region65: #{tpu_custom_call.1} parent=0
    _
  %s11 = ssub.s32 1, %s9
  %s12 = scalar_select 0, %s11, %s9
  loop: start=0, step=1, limit=4
  $region2: #{tpu_custom_call.1} parent=0 // loop_pre_header
    _
  $region3: #{tpu_custom_call.1} parent=0 // loop_header
    %s14 = sphi 0, %s18
    %p15 = scmp.ge.s32.totalorder %s14, 4
    %s24 = sphi 0, %s26
    %s27 = sphi 0, %s24
    %s28 = sphi 0, %s27
    %s44 = sphi 0, %s28
    %s48 = sphi 0, %s48
    %s50 = sphi 0, %s48
    %s51 = sphi 0, %s50
    %s65 = sphi 0, %s51
    %s69 = sphi 0, %s69
    %s71 = sphi 0, %s69
    %s72 = sphi 0, %s71
    %s86 = sphi 0, %s72
    %s90 = sphi 0, %s90
    %s92 = sphi 0, %s90
    %s93 = sphi 0, %s92
    %s107 = sphi 0, %s93
    %s111 = sphi 0, %s111
    %s113 = sphi 0, %s111
    %s114 = sphi 0, %s113
    %s128 = sphi 0, %s114
    %s132 = sphi 0, %s132
    %s134 = sphi 0, %s132
    %s135 = sphi 0, %s134
    %s149 = sphi 0, %s135
    %s153 = sphi 0, %s153
    %s155 = sphi 0, %s153
    %s156 = sphi 0, %s155
    %s170 = sphi 0, %s156
    %s174 = sphi 0, %s174
    %s176 = sphi 0, %s174
    %s177 = sphi 0, %s176
    %s191 = sphi 0, %s177
    %s197 = sphi 0, %s199
    %s200 = sphi 0, %s197
    %s201 = sphi 0, %s200
    %s217 = sphi 0, %s201
  $region4: #{tpu_custom_call.1} parent=0 // loop_header_branch
    %17 = sbr.rel (%p15) target = $region8
  $region5: #{tpu_custom_call.1} parent=0 // loop_body
    %s19 = ssub.s32 %s14, 1
    %s20 = ssub.s32 %s14, 2
    %s21 = sadd.s32 %s14, 1
    %s22 = ssub.s32 %s14, %s21
    %p23 = scmp.eq.s32.totalorder %s22, 0
    %s25 = sadd.s32 %s24, 1
    %s26 = scalar_select %p23, %s24, %s25
    %p29 = pneg %p23
    %p30 = scmp.eq.s32.totalorder %s14, 1
    %p31 = por %p29, %p30
    %p32 = scmp.ne.s32.totalorder %s24, %s27
    %p33 = scmp.eq.s32.totalorder %s14, 0
    %p34 = por %p32, %p33
    %p35 = scmp.ne.s32.totalorder %s24, %s27
    %p36 = scmp.eq.s32.totalorder %s19, 1
    %p37 = por %p35, %p36
    %p38 = scmp.ne.s32.totalorder %s27, %s28
    %p39 = scmp.eq.s32.totalorder %s19, 0
    %p40 = por %p38, %p39
    %p41 = scmp.ne.s32.totalorder %s27, %s28
    %p42 = scmp.eq.s32.totalorder %s20, 1
    %p43 = por %p41, %p42
    %p45 = scmp.ne.s32.totalorder %s28, %s44
    %p46 = scmp.eq.s32.totalorder %s20, 0
    %p47 = por %p45, %p46
    %s49 = sadd.s32 %s48, 1
    %p52 = scmp.eq.s32.totalorder %s14, 1
    %p53 = scmp.ne.s32.totalorder %s48, %s50
    %p54 = scmp.eq.s32.totalorder %s14, 0
    %p55 = por %p53, %p54
    %p56 = scmp.ne.s32.totalorder %s48, %s50
    %p57 = scmp.eq.s32.totalorder %s19, 1
    %p58 = por %p56, %p57
    %p59 = scmp.ne.s32.totalorder %s50, %s51
    %p60 = scmp.eq.s32.totalorder %s19, 0
    %p61 = por %p59, %p60
    %p62 = scmp.ne.s32.totalorder %s50, %s51
    %p63 = scmp.eq.s32.totalorder %s20, 1
    %p64 = por %p62, %p63
    %p66 = scmp.ne.s32.totalorder %s51, %s65
    %p67 = scmp.eq.s32.totalorder %s20, 0
    %p68 = por %p66, %p67
    %s70 = sadd.s32 %s69, 1
    %p73 = scmp.eq.s32.totalorder %s14, 1
    %p74 = scmp.ne.s32.totalorder %s69, %s71
    %p75 = scmp.eq.s32.totalorder %s14, 0
    %p76 = por %p74, %p75
    %p77 = scmp.ne.s32.totalorder %s69, %s71
    %p78 = scmp.eq.s32.totalorder %s19, 1
    %p79 = por %p77, %p78
    %p80 = scmp.ne.s32.totalorder %s71, %s72
    %p81 = scmp.eq.s32.totalorder %s19, 0
    %p82 = por %p80, %p81
    %p83 = scmp.ne.s32.totalorder %s71, %s72
    %p84 = scmp.eq.s32.totalorder %s20, 1
    %p85 = por %p83, %p84
    %p87 = scmp.ne.s32.totalorder %s72, %s86
    %p88 = scmp.eq.s32.totalorder %s20, 0
    %p89 = por %p87, %p88
    %s91 = sadd.s32 %s90, 1
    %p94 = scmp.eq.s32.totalorder %s14, 1
    %p95 = scmp.ne.s32.totalorder %s90, %s92
    %p96 = scmp.eq.s32.totalorder %s14, 0
    %p97 = por %p95, %p96
    %p98 = scmp.ne.s32.totalorder %s90, %s92
    %p99 = scmp.eq.s32.totalorder %s19, 1
    %p100 = por %p98, %p99
    %p101 = scmp.ne.s32.totalorder %s92, %s93
    %p102 = scmp.eq.s32.totalorder %s19, 0
    %p103 = por %p101, %p102
    %p104 = scmp.ne.s32.totalorder %s92, %s93
    %p105 = scmp.eq.s32.totalorder %s20, 1
    %p106 = por %p104, %p105
    %p108 = scmp.ne.s32.totalorder %s93, %s107
    %p109 = scmp.eq.s32.totalorder %s20, 0
    %p110 = por %p108, %p109
    %s112 = sadd.s32 %s111, 1
    %p115 = scmp.eq.s32.totalorder %s14, 1
    %p116 = scmp.ne.s32.totalorder %s111, %s113
    %p117 = scmp.eq.s32.totalorder %s14, 0
    %p118 = por %p116, %p117
    %p119 = scmp.ne.s32.totalorder %s111, %s113
    %p120 = scmp.eq.s32.totalorder %s19, 1
    %p121 = por %p119, %p120
    %p122 = scmp.ne.s32.totalorder %s113, %s114
    %p123 = scmp.eq.s32.totalorder %s19, 0
    %p124 = por %p122, %p123
    %p125 = scmp.ne.s32.totalorder %s113, %s114
    %p126 = scmp.eq.s32.totalorder %s20, 1
    %p127 = por %p125, %p126
    %p129 = scmp.ne.s32.totalorder %s114, %s128
    %p130 = scmp.eq.s32.totalorder %s20, 0
    %p131 = por %p129, %p130
    %s133 = sadd.s32 %s132, 1
    %p136 = scmp.eq.s32.totalorder %s14, 1
    %p137 = scmp.ne.s32.totalorder %s132, %s134
    %p138 = scmp.eq.s32.totalorder %s14, 0
    %p139 = por %p137, %p138
    %p140 = scmp.ne.s32.totalorder %s132, %s134
    %p141 = scmp.eq.s32.totalorder %s19, 1
    %p142 = por %p140, %p141
    %p143 = scmp.ne.s32.totalorder %s134, %s135
    %p144 = scmp.eq.s32.totalorder %s19, 0
    %p145 = por %p143, %p144
    %p146 = scmp.ne.s32.totalorder %s134, %s135
    %p147 = scmp.eq.s32.totalorder %s20, 1
    %p148 = por %p146, %p147
    %p150 = scmp.ne.s32.totalorder %s135, %s149
    %p151 = scmp.eq.s32.totalorder %s20, 0
    %p152 = por %p150, %p151
    %s154 = sadd.s32 %s153, 1
    %p157 = scmp.eq.s32.totalorder %s14, 1
    %p158 = scmp.ne.s32.totalorder %s153, %s155
    %p159 = scmp.eq.s32.totalorder %s14, 0
    %p160 = por %p158, %p159
    %p161 = scmp.ne.s32.totalorder %s153, %s155
    %p162 = scmp.eq.s32.totalorder %s19, 1
    %p163 = por %p161, %p162
    %p164 = scmp.ne.s32.totalorder %s155, %s156
    %p165 = scmp.eq.s32.totalorder %s19, 0
    %p166 = por %p164, %p165
    %p167 = scmp.ne.s32.totalorder %s155, %s156
    %p168 = scmp.eq.s32.totalorder %s20, 1
    %p169 = por %p167, %p168
    %p171 = scmp.ne.s32.totalorder %s156, %s170
    %p172 = scmp.eq.s32.totalorder %s20, 0
    %p173 = por %p171, %p172
    %s175 = sadd.s32 %s174, 1
    %p178 = scmp.eq.s32.totalorder %s14, 1
    %p179 = scmp.ne.s32.totalorder %s174, %s176
    %p180 = scmp.eq.s32.totalorder %s14, 0
    %p181 = por %p179, %p180
    %p182 = scmp.ne.s32.totalorder %s174, %s176
    %p183 = scmp.eq.s32.totalorder %s19, 1
    %p184 = por %p182, %p183
    %p185 = scmp.ne.s32.totalorder %s176, %s177
    %p186 = scmp.eq.s32.totalorder %s19, 0
    %p187 = por %p185, %p186
    %p188 = scmp.ne.s32.totalorder %s176, %s177
    %p189 = scmp.eq.s32.totalorder %s20, 1
    %p190 = por %p188, %p189
    %p192 = scmp.ne.s32.totalorder %s177, %s191
    %p193 = scmp.eq.s32.totalorder %s20, 0
    %p194 = por %p192, %p193
    %s195 = ssub.s32 %s14, %s21
    %p196 = scmp.eq.s32.totalorder %s195, 0
    %s198 = sadd.s32 %s197, 1
    %s199 = scalar_select %p196, %s197, %s198
    %p202 = pneg %p196
    %p203 = scmp.eq.s32.totalorder %s14, 1
    %p204 = por %p202, %p203
    %p205 = scmp.ne.s32.totalorder %s197, %s200
    %p206 = scmp.eq.s32.totalorder %s14, 0
    %p207 = por %p205, %p206
    %p208 = scmp.ne.s32.totalorder %s197, %s200
    %p209 = scmp.eq.s32.totalorder %s19, 1
    %p210 = por %p208, %p209
    %p211 = scmp.ne.s32.totalorder %s200, %s201
    %p212 = scmp.eq.s32.totalorder %s19, 0
    %p213 = por %p211, %p212
    %p214 = scmp.ne.s32.totalorder %s200, %s201
    %p215 = scmp.eq.s32.totalorder %s20, 1
    %p216 = por %p214, %p215
    %p218 = scmp.ne.s32.totalorder %s201, %s217
    %p219 = scmp.eq.s32.totalorder %s20, 0
    %p220 = por %p218, %p219
    %p221 = scmp.le.s32.totalorder 1, %s14
    %p222 = scmp.lt.s32.totalorder %s14, 3
    %p223 = pnand %p221, %p222
    %p224 = pneg %p223
    // Predicated region
    $region9: #{tpu_custom_call.1} parent=5 // pred_check
      _
    $region10: #{tpu_custom_call.1} parent=5 // pred_check_branch
      %226 = sbr.rel (%p223) target = $region12
    $region11: #{tpu_custom_call.1} parent=5 // pred_region
      %s227 = ssub.s32 %s14, 1
      // Predicated region
      $region13: #{tpu_custom_call.1} parent=11 // pred_check
        %p228 = pneg %p61
      $region14: #{tpu_custom_call.1} parent=11 // pred_check_branch
        %230 = sbr.rel (%p228) target = $region16
      $region15: #{tpu_custom_call.1} parent=11 // pred_region
        _
      $region16: #{tpu_custom_call.1} parent=11 // pred_fallthru
        _
      // Predicated region
      $region17: #{tpu_custom_call.1} parent=11 // pred_check
        %p231 = pneg %p82
      $region18: #{tpu_custom_call.1} parent=11 // pred_check_branch
        %233 = sbr.rel (%p231) target = $region20
      $region19: #{tpu_custom_call.1} parent=11 // pred_region
        _
      $region20: #{tpu_custom_call.1} parent=11 // pred_fallthru
        _
      // Predicated region
      $region21: #{tpu_custom_call.1} parent=11 // pred_check
        %p234 = pneg %p103
      $region22: #{tpu_custom_call.1} parent=11 // pred_check_branch
        %236 = sbr.rel (%p234) target = $region24
      $region23: #{tpu_custom_call.1} parent=11 // pred_region
        _
      $region24: #{tpu_custom_call.1} parent=11 // pred_fallthru
        _
      // Predicated region
      $region25: #{tpu_custom_call.1} parent=11 // pred_check
        %p237 = pneg %p124
      $region26: #{tpu_custom_call.1} parent=11 // pred_check_branch
        %239 = sbr.rel (%p237) target = $region28
      $region27: #{tpu_custom_call.1} parent=11 // pred_region
        _
      $region28: #{tpu_custom_call.1} parent=11 // pred_fallthru
        _
      // Predicated region
      $region29: #{tpu_custom_call.1} parent=11 // pred_check
        %p240 = pneg %p145
      $region30: #{tpu_custom_call.1} parent=11 // pred_check_branch
        %242 = sbr.rel (%p240) target = $region32
      $region31: #{tpu_custom_call.1} parent=11 // pred_region
        _
      $region32: #{tpu_custom_call.1} parent=11 // pred_fallthru
        _
      // Predicated region
      $region33: #{tpu_custom_call.1} parent=11 // pred_check
        %p243 = pneg %p166
      $region34: #{tpu_custom_call.1} parent=11 // pred_check_branch
        %245 = sbr.rel (%p243) target = $region36
      $region35: #{tpu_custom_call.1} parent=11 // pred_region
        _
      $region36: #{tpu_custom_call.1} parent=11 // pred_fallthru
        _
      // Predicated region
      $region37: #{tpu_custom_call.1} parent=11 // pred_check
        %p246 = pneg %p187
      $region38: #{tpu_custom_call.1} parent=11 // pred_check_branch
        %248 = sbr.rel (%p246) target = $region40
      $region39: #{tpu_custom_call.1} parent=11 // pred_region
        _
      $region40: #{tpu_custom_call.1} parent=11 // pred_fallthru
        _
    $region12: #{tpu_custom_call.1} parent=5 // pred_fallthru
      _
    %p249 = scmp.lt.s32.totalorder %s14, 2
    // Predicated region
    $region41: #{tpu_custom_call.1} parent=5 // pred_check
      %p250 = pneg %p249
    $region42: #{tpu_custom_call.1} parent=5 // pred_check_branch
      %252 = sbr.rel (%p250) target = $region44
    $region43: #{tpu_custom_call.1} parent=5 // pred_region
      // Predicated region
      $region45: #{tpu_custom_call.1} parent=43 // pred_check
        %p253 = pneg %p34
      $region46: #{tpu_custom_call.1} parent=43 // pred_check_branch
        %255 = sbr.rel (%p253) target = $region48
      $region47: #{tpu_custom_call.1} parent=43 // pred_region
        %p256 = scmp.lt.s32.totalorder %s14, 1
        %s257 = scalar_select %p256, %s14, 1
        %s258 = smul.addr %s257, 4
        %s259 = scalar_lea.vmem %s0, %s258
      $region48: #{tpu_custom_call.1} parent=43 // pred_fallthru
        _
    $region44: #{tpu_custom_call.1} parent=5 // pred_fallthru
      _
    %p260 = scmp.le.s32.totalorder 1, %s14
    %p261 = scmp.lt.s32.totalorder %s14, 3
    %p262 = pnand %p260, %p261
    %p263 = pneg %p262
    // Predicated region
    $region49: #{tpu_custom_call.1} parent=5 // pred_check
      _
    $region50: #{tpu_custom_call.1} parent=5 // pred_check_branch
      %265 = sbr.rel (%p262) target = $region52
    $region51: #{tpu_custom_call.1} parent=5 // pred_region
      %s266 = ssub.s32 %s14, 1
      %p267 = scmp.lt.s32.totalorder %s19, 1
      %s268 = scalar_select %p267, %s19, 1
      %s269 = smul.addr %s268, 4
      %s270 = scalar_lea.vmem %s0, %s269
      %p271 = pneg %p40
      %p272 = pneg %p37
      %p273 = pneg %p61
      %p274 = pneg %p58
      %p275 = pneg %p82
      %p276 = pneg %p79
      %p277 = pneg %p103
      %p278 = pneg %p100
      %p279 = pneg %p124
      %p280 = pneg %p121
      %p281 = pneg %p145
      %p282 = pneg %p142
      %p283 = pneg %p166
      %p284 = pneg %p163
      %p285 = pneg %p187
      %p286 = pneg %p184
      %p287 = pneg %p213
      %p288 = pneg %p210
      %p289 = scmp.lt.s32.totalorder %s19, 1
      %s290 = scalar_select %p289, %s19, 1
      %s291 = smul.addr %s290, 4
      %s292 = scalar_lea.vmem %s8, %s291
      %p293 = scmp.lt.s32.totalorder %s19, 1
      %s294 = scalar_select %p293, %s19, 1
      %s295 = smul.addr %s294, 4
      %s296 = scalar_lea.vmem %s0, %s295
      %p297 = scmp.lt.s32.totalorder %s19, 1
      %s298 = scalar_select %p297, %s19, 1
      %s299 = smul.addr %s298, 4
      %s300 = scalar_lea.vmem %s8, %s299
      %v301 = vld [vmem:[%s296] sm:$0xf]
      %303 = vrot.lane.b32.xlu0 %v301, 2
      %v304 = vpop.permute.xlu0 %303
      %vm306 = vcmask 15360
      %v307 = vsel %vm306, 0.0, %v304
      %v308 = vsel %vm306, %v304, 0.0
      %v309 = vld [vmem:[%s1] sm:$0xff]
      %v310 = vld [vmem:[%s1 + $0x8] sm:$0xff]
      %v311 = vld [vmem:[%s1 + $0x10] sm:$0x1f]
      %s312 = scalar_lea.vmem %s1, 24
      %v313 = vld [vmem:[%s312] sm:$0xff]
      %v314 = vld [vmem:[%s312 + $0x8] sm:$0xff]
      %v315 = vld [vmem:[%s312 + $0x10] sm:$0x1f]
      %318 = vrot.lane.b32.xlu0 %v307, 127
      %v319 = vpop.permute.xlu0 %318
      %320 = vrot.lane.b32.xlu0 %v308, 127
      %v321 = vpop.permute.xlu0 %320
      %vm322 = vcmask 1039360
      %v323 = vsel %vm322, %v319, %v321
      %vm324 = vcmask 31744
      %v326 = vsel %vm324, %v313, 0
      %v329 = vsel %vm324, %v314, 0
      %v332 = vsel %vm324, %v315, 0
      %vm334 = vcmask 1043456
      %v335 = vsel %vm334, %v323, 0
      %337 = vmatpush.msra.mxu0 0.0
      %338 = vmatpush.msra.mxu0 0.0
      %339 = vmatpush.msra.mxu0 0.0
      %340 = vmatpush.msra.mxu0 0.0
      %341 = vmatpush.msra.mxu0 0.0
      %342 = vmatpush.msra.mxu0 0.0
      %343 = vmatpush.msra.mxu0 0.0
      %344 = vmatpush.msra.mxu0 0.0
      %345 = vmatpush.msra.mxu0 0.0
      %346 = vmatpush.msra.mxu0 0.0
      %347 = vmatpush.msra.mxu0 0.0
      %348 = vmatpush.msra.mxu0 0.0
      %349 = vmatpush.msra.mxu0 0.0
      %350 = vmatpush.msra.mxu0 0.0
      %351 = vmatpush.msra.mxu0 0.0
      %352 = vmatpush.msra.mxu0 %v335
      %353 = vmatmul.f32.gmra.mxu0 %v326
      %v354 = vpop.f32.mrf.mxu0
      %v355 = vadd.f32 0.0, %v354
      %356 = vmatmul.f32.gmra.mxu0 %v329
      %v357 = vpop.f32.mrf.mxu0
      %v358 = vadd.f32 0.0, %v357
      %359 = vmatmul.f32.gmra.mxu0 %v332
      %v360 = vpop.f32.mrf.mxu0
      %v361 = vadd.f32 0.0, %v360
      %362 = vdwg.mxu0
      %v364 = vsel %vm324, %v309, 0
      %v367 = vsel %vm324, %v310, 0
      %v370 = vsel %vm324, %v311, 0
      %v372 = vsel %vm334, %v307, 0
      %374 = vmatpush.msra.mxu0 0.0
      %375 = vmatpush.msra.mxu0 0.0
      %376 = vmatpush.msra.mxu0 0.0
      %377 = vmatpush.msra.mxu0 0.0
      %378 = vmatpush.msra.mxu0 0.0
      %379 = vmatpush.msra.mxu0 0.0
      %380 = vmatpush.msra.mxu0 0.0
      %381 = vmatpush.msra.mxu0 0.0
      %382 = vmatpush.msra.mxu0 0.0
      %383 = vmatpush.msra.mxu0 0.0
      %384 = vmatpush.msra.mxu0 0.0
      %385 = vmatpush.msra.mxu0 0.0
      %386 = vmatpush.msra.mxu0 0.0
      %387 = vmatpush.msra.mxu0 0.0
      %388 = vmatpush.msra.mxu0 0.0
      %389 = vmatpush.msra.mxu0 %v372
      %390 = vmatmul.f32.gmra.mxu0 %v364
      %v391 = vpop.f32.mrf.mxu0
      %v392 = vadd.f32 %v355, %v391
      %393 = vmatmul.f32.gmra.mxu0 %v367
      %v394 = vpop.f32.mrf.mxu0
      %v395 = vadd.f32 %v358, %v394
      %396 = vmatmul.f32.gmra.mxu0 %v370
      %v397 = vpop.f32.mrf.mxu0
      %v398 = vadd.f32 %v361, %v397
      %399 = vdwg.mxu0
      %s400 = scalar_lea.vmem %s1, 48
      %v401 = vld [vmem:[%s400] sm:$0xff]
      %v402 = vld [vmem:[%s400 + $0x8] sm:$0xff]
      %v403 = vld [vmem:[%s400 + $0x10] sm:$0x1f]
      %404 = vrot.lane.b32.xlu0 %v307, 126
      %v405 = vpop.permute.xlu0 %404
      %406 = vrot.lane.b32.xlu0 %v308, 126
      %v407 = vpop.permute.xlu0 %406
      %vm408 = vcmask 1031168
      %v409 = vsel %vm408, %v405, %v407
      %v411 = vsel %vm324, %v401, 0
      %v414 = vsel %vm324, %v402, 0
      %v417 = vsel %vm324, %v403, 0
      %v419 = vsel %vm334, %v409, 0
      %421 = vmatpush.msra.mxu0 0.0
      %422 = vmatpush.msra.mxu0 0.0
      %423 = vmatpush.msra.mxu0 0.0
      %424 = vmatpush.msra.mxu0 0.0
      %425 = vmatpush.msra.mxu0 0.0
      %426 = vmatpush.msra.mxu0 0.0
      %427 = vmatpush.msra.mxu0 0.0
      %428 = vmatpush.msra.mxu0 0.0
      %429 = vmatpush.msra.mxu0 0.0
      %430 = vmatpush.msra.mxu0 0.0
      %431 = vmatpush.msra.mxu0 0.0
      %432 = vmatpush.msra.mxu0 0.0
      %433 = vmatpush.msra.mxu0 0.0
      %434 = vmatpush.msra.mxu0 0.0
      %435 = vmatpush.msra.mxu0 0.0
      %436 = vmatpush.msra.mxu0 %v419
      %437 = vmatmul.f32.gmra.mxu0 %v411
      %v438 = vpop.f32.mrf.mxu0
      %v439 = vadd.f32 0.0, %v438
      %440 = vmatmul.f32.gmra.mxu0 %v414
      %v441 = vpop.f32.mrf.mxu0
      %v442 = vadd.f32 0.0, %v441
      %443 = vmatmul.f32.gmra.mxu0 %v417
      %v444 = vpop.f32.mrf.mxu0
      %v445 = vadd.f32 0.0, %v444
      %446 = vdwg.mxu0
      %v447 = vadd.f32 %v392, %v439
      %v448 = vadd.f32 %v395, %v442
      %v449 = vadd.f32 %v398, %v445
      %s450 = scalar_lea.vmem %s1, 72
      %v451 = vld [vmem:[%s450] sm:$0xff]
      %v452 = vld [vmem:[%s450 + $0x8] sm:$0xff]
      %v453 = vld [vmem:[%s450 + $0x10] sm:$0x1f]
      %454 = vrot.lane.b32.xlu0 %v307, 125
      %v455 = vpop.permute.xlu0 %454
      %456 = vrot.lane.b32.xlu0 %v308, 125
      %v457 = vpop.permute.xlu0 %456
      %vm458 = vcmask 1022976
      %v459 = vsel %vm458, %v455, %v457
      %v461 = vsel %vm324, %v451, 0
      %v464 = vsel %vm324, %v452, 0
      %v467 = vsel %vm324, %v453, 0
      %v469 = vsel %vm334, %v459, 0
      %471 = vmatpush.msra.mxu0 0.0
      %472 = vmatpush.msra.mxu0 0.0
      %473 = vmatpush.msra.mxu0 0.0
      %474 = vmatpush.msra.mxu0 0.0
      %475 = vmatpush.msra.mxu0 0.0
      %476 = vmatpush.msra.mxu0 0.0
      %477 = vmatpush.msra.mxu0 0.0
      %478 = vmatpush.msra.mxu0 0.0
      %479 = vmatpush.msra.mxu0 0.0
      %480 = vmatpush.msra.mxu0 0.0
      %481 = vmatpush.msra.mxu0 0.0
      %482 = vmatpush.msra.mxu0 0.0
      %483 = vmatpush.msra.mxu0 0.0
      %484 = vmatpush.msra.mxu0 0.0
      %485 = vmatpush.msra.mxu0 0.0
      %486 = vmatpush.msra.mxu0 %v469
      %487 = vmatmul.f32.gmra.mxu0 %v461
      %v488 = vpop.f32.mrf.mxu0
      %v489 = vadd.f32 0.0, %v488
      %490 = vmatmul.f32.gmra.mxu0 %v464
      %v491 = vpop.f32.mrf.mxu0
      %v492 = vadd.f32 0.0, %v491
      %493 = vmatmul.f32.gmra.mxu0 %v467
      %v494 = vpop.f32.mrf.mxu0
      %v495 = vadd.f32 0.0, %v494
      %496 = vdwg.mxu0
      %v497 = vadd.f32 %v447, %v489
      %v498 = vadd.f32 %v448, %v492
      %v499 = vadd.f32 %v449, %v495
      %s500 = scalar_lea.vmem %s1, 96
      %v501 = vld [vmem:[%s500] sm:$0xff]
      %v502 = vld [vmem:[%s500 + $0x8] sm:$0xff]
      %v503 = vld [vmem:[%s500 + $0x10] sm:$0x1f]
      %504 = vrot.lane.b32.xlu0 %v307, 124
      %v505 = vpop.permute.xlu0 %504
      %506 = vrot.lane.b32.xlu0 %v308, 124
      %v507 = vpop.permute.xlu0 %506
      %vm508 = vcmask 1014784
      %v509 = vsel %vm508, %v505, %v507
      %v511 = vsel %vm324, %v501, 0
      %v514 = vsel %vm324, %v502, 0
      %v517 = vsel %vm324, %v503, 0
      %v519 = vsel %vm334, %v509, 0
      %521 = vmatpush.msra.mxu0 0.0
      %522 = vmatpush.msra.mxu0 0.0
      %523 = vmatpush.msra.mxu0 0.0
      %524 = vmatpush.msra.mxu0 0.0
      %525 = vmatpush.msra.mxu0 0.0
      %526 = vmatpush.msra.mxu0 0.0
      %527 = vmatpush.msra.mxu0 0.0
      %528 = vmatpush.msra.mxu0 0.0
      %529 = vmatpush.msra.mxu0 0.0
      %530 = vmatpush.msra.mxu0 0.0
      %531 = vmatpush.msra.mxu0 0.0
      %532 = vmatpush.msra.mxu0 0.0
      %533 = vmatpush.msra.mxu0 0.0
      %534 = vmatpush.msra.mxu0 0.0
      %535 = vmatpush.msra.mxu0 0.0
      %536 = vmatpush.msra.mxu0 %v519
      %537 = vmatmul.f32.gmra.mxu0 %v511
      %v538 = vpop.f32.mrf.mxu0
      %v539 = vadd.f32 0.0, %v538
      %540 = vmatmul.f32.gmra.mxu0 %v514
      %v541 = vpop.f32.mrf.mxu0
      %v542 = vadd.f32 0.0, %v541
      %543 = vmatmul.f32.gmra.mxu0 %v517
      %v544 = vpop.f32.mrf.mxu0
      %v545 = vadd.f32 0.0, %v544
      %546 = vdwg.mxu0
      %v547 = vadd.f32 %v497, %v539
      %v548 = vadd.f32 %v498, %v542
      %v549 = vadd.f32 %v499, %v545
      %v550 = vld [vmem:[%s7] sm:$0xff]
      %v551 = vld [vmem:[%s7 + $0x8] sm:$0xff]
      %v552 = vld [vmem:[%s7 + $0x10] sm:$0x1f]
      %554 = vset.pattern.permute.xlu0 0
      %555 = vperm.xlu0 %554, %v550
      %v556 = vpop.permute.xlu0 %555
      %559 = vset.pattern.permute.xlu0 0
      %560 = vperm.xlu0 %559, %v551
      %v561 = vpop.permute.xlu0 %560
      %564 = vset.pattern.permute.xlu0 0
      %565 = vperm.xlu0 %564, %v552
      %v566 = vpop.permute.xlu0 %565
      %v568 = vadd.f32 %v547, %v556
      %v569 = vadd.f32 %v548, %v561
      %v570 = vadd.f32 %v549, %v566
      %v571 = vmax.f32 %v568, 0.0
      %v572 = vmax.f32 %v569, 0.0
      %vm573 = vcmask 1044482
      %v574 = vsel %vm573, %v570, -inf
      %v575 = vrot.slane %v574, 4
      %v576 = vmax.f32 %v574, %v575
      %v577 = vrot.slane %v576, 2
      %v578 = vmax.f32 %v576, %v577
      %v579 = vrot.slane %v578, 1
      %v580 = vmax.f32 %v578, %v579
      %v581 = vsub.f32 %v570, %v580
      %v582 = vmul.f32 %v581, 1.442695
      %v583 = vpow.pop %v582
      %v585 = vrot.slane %v583, 2
      %vm587 = vcmask 1042432
      %v588 = vsel %vm587, %v585, 0.0
      %v589 = vrot.slane %v588, 4
      %v590 = vadd.f32 %v588, %v589
      %v591 = vrot.slane %v590, 2
      %v592 = vadd.f32 %v590, %v591
      %v593 = vrot.slane %v592, 1
      %v594 = vadd.f32 %v592, %v593
      %v595 = vlog2.pop %v594
      %v596 = vmul.f32 %v595, 0.6931472
      %v597 = vsub.f32 %v581, %v596
      %v598 = vld [vmem:[%s2] sm:$0x3f]
      %v599 = vld [vmem:[%s7] sm:$0x3f]
      %601 = vset.pattern.permute.xlu0 1
      %602 = vperm.xlu0 %601, %v599
      %v603 = vpop.permute.xlu0 %602
      %vm605 = vcmask 130048
      %v607 = vsel %vm605, %v598, 0
      %609 = vmatpush.msra.mxu0 0.0
      %610 = vmatpush.msra.mxu0 0.0
      %611 = vmatpush.msra.mxu0 0.0
      %612 = vmatpush.msra.mxu0 0.0
      %613 = vmatpush.msra.mxu0 0.0
      %614 = vmatpush.msra.mxu0 0.0
      %615 = vmatpush.msra.mxu0 0.0
      %616 = vmatpush.msra.mxu0 0.0
      %617 = vmatpush.msra.mxu0 0.0
      %618 = vmatpush.msra.mxu0 0.0
      %619 = vmatpush.msra.mxu0 0.0
      %620 = vmatpush.msra.mxu0 0.0
      %621 = vmatpush.msra.mxu0 0.0
      %622 = vmatpush.msra.mxu0 0.0
      %623 = vmatpush.msra.mxu0 %v572
      %624 = vmatpush.msra.mxu0 %v571
      %625 = vmatmul.f32.gmra.mxu0 %v607
      %v626 = vpop.f32.mrf.mxu0
      %v627 = vadd.f32 %v603, %v626
      %628 = vdwg.mxu0
      %v629 = vmax.f32 %v627, 0.0
      %630 = vset.pattern.permute.xlu0 2
      %631 = vperm.xlu0 %630, %v599
      %v632 = vpop.permute.xlu0 %631
      %vm634 = vcmp.gt.f32.partialorder %v629, %v632
      %v635 = vsel %vm634, %v629, 0.0
      %v637 = vrot.slane %v570, 2
      %vm639 = vcmask 1045504
      %v640 = vsel %vm639, %v635, %v637
      %642 = vrot.lane.b32.xlu0 %v640, 8
      %v643 = vpop.permute.xlu0 %642
      %vm645 = vcmask 64512
      %v646 = vsel %vm645, 0.0, %v643
      %v647 = vsel %vm645, %v643, 0.0
      %v648 = vld [vmem:[%s3] sm:$0xff]
      %v649 = vld [vmem:[%s3 + $0x8] sm:$0xff]
      %s650 = scalar_lea.vmem %s3, 16
      %v651 = vld [vmem:[%s650] sm:$0xff]
      %v652 = vld [vmem:[%s650 + $0x8] sm:$0xff]
      %655 = vrot.lane.b32.xlu0 %v646, 127
      %v656 = vpop.permute.xlu0 %655
      %657 = vrot.lane.b32.xlu0 %v647, 127
      %v658 = vpop.permute.xlu0 %657
      %v659 = vsel %vm322, %v656, %v658
      %v662 = vsel %vm645, %v651, 0
      %v665 = vsel %vm645, %v652, 0
      %667 = vmatpush.msra.mxu0 0.0
      %668 = vmatpush.msra.mxu0 0.0
      %669 = vmatpush.msra.mxu0 0.0
      %670 = vmatpush.msra.mxu0 0.0
      %671 = vmatpush.msra.mxu0 0.0
      %672 = vmatpush.msra.mxu0 0.0
      %673 = vmatpush.msra.mxu0 0.0
      %674 = vmatpush.msra.mxu0 0.0
      %675 = vmatpush.msra.mxu0 0.0
      %676 = vmatpush.msra.mxu0 0.0
      %677 = vmatpush.msra.mxu0 0.0
      %678 = vmatpush.msra.mxu0 0.0
      %679 = vmatpush.msra.mxu0 0.0
      %680 = vmatpush.msra.mxu0 0.0
      %681 = vmatpush.msra.mxu0 0.0
      %682 = vmatpush.msra.mxu0 %v659
      %683 = vmatmul.f32.gmra.mxu0 %v662
      %v684 = vpop.f32.mrf.mxu0
      %v685 = vadd.f32 0.0, %v684
      %686 = vmatmul.f32.gmra.mxu0 %v665
      %v687 = vpop.f32.mrf.mxu0
      %v688 = vadd.f32 0.0, %v687
      %689 = vdwg.mxu0
      %v691 = vsel %vm645, %v648, 0
      %v694 = vsel %vm645, %v649, 0
      %696 = vmatpush.msra.mxu0 0.0
      %697 = vmatpush.msra.mxu0 0.0
      %698 = vmatpush.msra.mxu0 0.0
      %699 = vmatpush.msra.mxu0 0.0
      %700 = vmatpush.msra.mxu0 0.0
      %701 = vmatpush.msra.mxu0 0.0
      %702 = vmatpush.msra.mxu0 0.0
      %703 = vmatpush.msra.mxu0 0.0
      %704 = vmatpush.msra.mxu0 0.0
      %705 = vmatpush.msra.mxu0 0.0
      %706 = vmatpush.msra.mxu0 0.0
      %707 = vmatpush.msra.mxu0 0.0
      %708 = vmatpush.msra.mxu0 0.0
      %709 = vmatpush.msra.mxu0 0.0
      %710 = vmatpush.msra.mxu0 0.0
      %711 = vmatpush.msra.mxu0 %v646
      %712 = vmatmul.f32.gmra.mxu0 %v691
      %v713 = vpop.f32.mrf.mxu0
      %v714 = vadd.f32 %v685, %v713
      %715 = vmatmul.f32.gmra.mxu0 %v694
      %v716 = vpop.f32.mrf.mxu0
      %v717 = vadd.f32 %v688, %v716
      %718 = vdwg.mxu0
      %s719 = scalar_lea.vmem %s3, 32
      %v720 = vld [vmem:[%s719] sm:$0xff]
      %v721 = vld [vmem:[%s719 + $0x8] sm:$0xff]
      %722 = vrot.lane.b32.xlu0 %v646, 126
      %v723 = vpop.permute.xlu0 %722
      %724 = vrot.lane.b32.xlu0 %v647, 126
      %v725 = vpop.permute.xlu0 %724
      %v726 = vsel %vm408, %v723, %v725
      %v729 = vsel %vm645, %v720, 0
      %v732 = vsel %vm645, %v721, 0
      %734 = vmatpush.msra.mxu0 0.0
      %735 = vmatpush.msra.mxu0 0.0
      %736 = vmatpush.msra.mxu0 0.0
      %737 = vmatpush.msra.mxu0 0.0
      %738 = vmatpush.msra.mxu0 0.0
      %739 = vmatpush.msra.mxu0 0.0
      %740 = vmatpush.msra.mxu0 0.0
      %741 = vmatpush.msra.mxu0 0.0
      %742 = vmatpush.msra.mxu0 0.0
      %743 = vmatpush.msra.mxu0 0.0
      %744 = vmatpush.msra.mxu0 0.0
      %745 = vmatpush.msra.mxu0 0.0
      %746 = vmatpush.msra.mxu0 0.0
      %747 = vmatpush.msra.mxu0 0.0
      %748 = vmatpush.msra.mxu0 0.0
      %749 = vmatpush.msra.mxu0 %v726
      %750 = vmatmul.f32.gmra.mxu0 %v729
      %v751 = vpop.f32.mrf.mxu0
      %v752 = vadd.f32 0.0, %v751
      %753 = vmatmul.f32.gmra.mxu0 %v732
      %v754 = vpop.f32.mrf.mxu0
      %v755 = vadd.f32 0.0, %v754
      %756 = vdwg.mxu0
      %v757 = vadd.f32 %v714, %v752
      %v758 = vadd.f32 %v717, %v755
      %s759 = scalar_lea.vmem %s3, 48
      %v760 = vld [vmem:[%s759] sm:$0xff]
      %v761 = vld [vmem:[%s759 + $0x8] sm:$0xff]
      %762 = vrot.lane.b32.xlu0 %v646, 125
      %v763 = vpop.permute.xlu0 %762
      %764 = vrot.lane.b32.xlu0 %v647, 125
      %v765 = vpop.permute.xlu0 %764
      %v766 = vsel %vm458, %v763, %v765
      %v769 = vsel %vm645, %v760, 0
      %v772 = vsel %vm645, %v761, 0
      %774 = vmatpush.msra.mxu0 0.0
      %775 = vmatpush.msra.mxu0 0.0
      %776 = vmatpush.msra.mxu0 0.0
      %777 = vmatpush.msra.mxu0 0.0
      %778 = vmatpush.msra.mxu0 0.0
      %779 = vmatpush.msra.mxu0 0.0
      %780 = vmatpush.msra.mxu0 0.0
      %781 = vmatpush.msra.mxu0 0.0
      %782 = vmatpush.msra.mxu0 0.0
      %783 = vmatpush.msra.mxu0 0.0
      %784 = vmatpush.msra.mxu0 0.0
      %785 = vmatpush.msra.mxu0 0.0
      %786 = vmatpush.msra.mxu0 0.0
      %787 = vmatpush.msra.mxu0 0.0
      %788 = vmatpush.msra.mxu0 0.0
      %789 = vmatpush.msra.mxu0 %v766
      %790 = vmatmul.f32.gmra.mxu0 %v769
      %v791 = vpop.f32.mrf.mxu0
      %v792 = vadd.f32 0.0, %v791
      %793 = vmatmul.f32.gmra.mxu0 %v772
      %v794 = vpop.f32.mrf.mxu0
      %v795 = vadd.f32 0.0, %v794
      %796 = vdwg.mxu0
      %v797 = vadd.f32 %v757, %v792
      %v798 = vadd.f32 %v758, %v795
      %s799 = scalar_lea.vmem %s3, 64
      %v800 = vld [vmem:[%s799] sm:$0xff]
      %v801 = vld [vmem:[%s799 + $0x8] sm:$0xff]
      %802 = vrot.lane.b32.xlu0 %v646, 124
      %v803 = vpop.permute.xlu0 %802
      %804 = vrot.lane.b32.xlu0 %v647, 124
      %v805 = vpop.permute.xlu0 %804
      %v806 = vsel %vm508, %v803, %v805
      %v809 = vsel %vm645, %v800, 0
      %v812 = vsel %vm645, %v801, 0
      %814 = vmatpush.msra.mxu0 0.0
      %815 = vmatpush.msra.mxu0 0.0
      %816 = vmatpush.msra.mxu0 0.0
      %817 = vmatpush.msra.mxu0 0.0
      %818 = vmatpush.msra.mxu0 0.0
      %819 = vmatpush.msra.mxu0 0.0
      %820 = vmatpush.msra.mxu0 0.0
      %821 = vmatpush.msra.mxu0 0.0
      %822 = vmatpush.msra.mxu0 0.0
      %823 = vmatpush.msra.mxu0 0.0
      %824 = vmatpush.msra.mxu0 0.0
      %825 = vmatpush.msra.mxu0 0.0
      %826 = vmatpush.msra.mxu0 0.0
      %827 = vmatpush.msra.mxu0 0.0
      %828 = vmatpush.msra.mxu0 0.0
      %829 = vmatpush.msra.mxu0 %v806
      %830 = vmatmul.f32.gmra.mxu0 %v809
      %v831 = vpop.f32.mrf.mxu0
      %v832 = vadd.f32 0.0, %v831
      %833 = vmatmul.f32.gmra.mxu0 %v812
      %v834 = vpop.f32.mrf.mxu0
      %v835 = vadd.f32 0.0, %v834
      %836 = vdwg.mxu0
      %v837 = vadd.f32 %v797, %v832
      %v838 = vadd.f32 %v798, %v835
      %s839 = scalar_lea.vmem %s3, 80
      %v840 = vld [vmem:[%s839] sm:$0xff]
      %v841 = vld [vmem:[%s839 + $0x8] sm:$0xff]
      %842 = vrot.lane.b32.xlu0 %v646, 123
      %v843 = vpop.permute.xlu0 %842
      %844 = vrot.lane.b32.xlu0 %v647, 123
      %v845 = vpop.permute.xlu0 %844
      %vm846 = vcmask 1006592
      %v847 = vsel %vm846, %v843, %v845
      %v850 = vsel %vm645, %v840, 0
      %v853 = vsel %vm645, %v841, 0
      %855 = vmatpush.msra.mxu0 0.0
      %856 = vmatpush.msra.mxu0 0.0
      %857 = vmatpush.msra.mxu0 0.0
      %858 = vmatpush.msra.mxu0 0.0
      %859 = vmatpush.msra.mxu0 0.0
      %860 = vmatpush.msra.mxu0 0.0
      %861 = vmatpush.msra.mxu0 0.0
      %862 = vmatpush.msra.mxu0 0.0
      %863 = vmatpush.msra.mxu0 0.0
      %864 = vmatpush.msra.mxu0 0.0
      %865 = vmatpush.msra.mxu0 0.0
      %866 = vmatpush.msra.mxu0 0.0
      %867 = vmatpush.msra.mxu0 0.0
      %868 = vmatpush.msra.mxu0 0.0
      %869 = vmatpush.msra.mxu0 0.0
      %870 = vmatpush.msra.mxu0 %v847
      %871 = vmatmul.f32.gmra.mxu0 %v850
      %v872 = vpop.f32.mrf.mxu0
      %v873 = vadd.f32 0.0, %v872
      %874 = vmatmul.f32.gmra.mxu0 %v853
      %v875 = vpop.f32.mrf.mxu0
      %v876 = vadd.f32 0.0, %v875
      %877 = vdwg.mxu0
      %v878 = vadd.f32 %v837, %v873
      %v879 = vadd.f32 %v838, %v876
      %s880 = scalar_lea.vmem %s3, 96
      %v881 = vld [vmem:[%s880] sm:$0xff]
      %v882 = vld [vmem:[%s880 + $0x8] sm:$0xff]
      %883 = vrot.lane.b32.xlu0 %v646, 122
      %v884 = vpop.permute.xlu0 %883
      %885 = vrot.lane.b32.xlu0 %v647, 122
      %v886 = vpop.permute.xlu0 %885
      %vm887 = vcmask 998400
      %v888 = vsel %vm887, %v884, %v886
      %v891 = vsel %vm645, %v881, 0
      %v894 = vsel %vm645, %v882, 0
      %896 = vmatpush.msra.mxu0 0.0
      %897 = vmatpush.msra.mxu0 0.0
      %898 = vmatpush.msra.mxu0 0.0
      %899 = vmatpush.msra.mxu0 0.0
      %900 = vmatpush.msra.mxu0 0.0
      %901 = vmatpush.msra.mxu0 0.0
      %902 = vmatpush.msra.mxu0 0.0
      %903 = vmatpush.msra.mxu0 0.0
      %904 = vmatpush.msra.mxu0 0.0
      %905 = vmatpush.msra.mxu0 0.0
      %906 = vmatpush.msra.mxu0 0.0
      %907 = vmatpush.msra.mxu0 0.0
      %908 = vmatpush.msra.mxu0 0.0
      %909 = vmatpush.msra.mxu0 0.0
      %910 = vmatpush.msra.mxu0 0.0
      %911 = vmatpush.msra.mxu0 %v888
      %912 = vmatmul.f32.gmra.mxu0 %v891
      %v913 = vpop.f32.mrf.mxu0
      %v914 = vadd.f32 0.0, %v913
      %915 = vmatmul.f32.gmra.mxu0 %v894
      %v916 = vpop.f32.mrf.mxu0
      %v917 = vadd.f32 0.0, %v916
      %918 = vdwg.mxu0
      %v919 = vadd.f32 %v878, %v914
      %v920 = vadd.f32 %v879, %v917
      %s921 = scalar_lea.vmem %s3, 112
      %v922 = vld [vmem:[%s921] sm:$0xff]
      %v923 = vld [vmem:[%s921 + $0x8] sm:$0xff]
      %924 = vrot.lane.b32.xlu0 %v646, 121
      %v925 = vpop.permute.xlu0 %924
      %926 = vrot.lane.b32.xlu0 %v647, 121
      %v927 = vpop.permute.xlu0 %926
      %vm928 = vcmask 990208
      %v929 = vsel %vm928, %v925, %v927
      %v932 = vsel %vm645, %v922, 0
      %v935 = vsel %vm645, %v923, 0
      %937 = vmatpush.msra.mxu0 0.0
      %938 = vmatpush.msra.mxu0 0.0
      %939 = vmatpush.msra.mxu0 0.0
      %940 = vmatpush.msra.mxu0 0.0
      %941 = vmatpush.msra.mxu0 0.0
      %942 = vmatpush.msra.mxu0 0.0
      %943 = vmatpush.msra.mxu0 0.0
      %944 = vmatpush.msra.mxu0 0.0
      %945 = vmatpush.msra.mxu0 0.0
      %946 = vmatpush.msra.mxu0 0.0
      %947 = vmatpush.msra.mxu0 0.0
      %948 = vmatpush.msra.mxu0 0.0
      %949 = vmatpush.msra.mxu0 0.0
      %950 = vmatpush.msra.mxu0 0.0
      %951 = vmatpush.msra.mxu0 0.0
      %952 = vmatpush.msra.mxu0 %v929
      %953 = vmatmul.f32.gmra.mxu0 %v932
      %v954 = vpop.f32.mrf.mxu0
      %v955 = vadd.f32 0.0, %v954
      %956 = vmatmul.f32.gmra.mxu0 %v935
      %v957 = vpop.f32.mrf.mxu0
      %v958 = vadd.f32 0.0, %v957
      %959 = vdwg.mxu0
      %v960 = vadd.f32 %v919, %v955
      %v961 = vadd.f32 %v920, %v958
      %s962 = scalar_lea.vmem %s3, 128
      %v963 = vld [vmem:[%s962] sm:$0xff]
      %v964 = vld [vmem:[%s962 + $0x8] sm:$0xff]
      %965 = vrot.lane.b32.xlu0 %v646, 120
      %v966 = vpop.permute.xlu0 %965
      %967 = vrot.lane.b32.xlu0 %v647, 120
      %v968 = vpop.permute.xlu0 %967
      %vm969 = vcmask 982016
      %v970 = vsel %vm969, %v966, %v968
      %v973 = vsel %vm645, %v963, 0
      %v976 = vsel %vm645, %v964, 0
      %978 = vmatpush.msra.mxu0 0.0
      %979 = vmatpush.msra.mxu0 0.0
      %980 = vmatpush.msra.mxu0 0.0
      %981 = vmatpush.msra.mxu0 0.0
      %982 = vmatpush.msra.mxu0 0.0
      %983 = vmatpush.msra.mxu0 0.0
      %984 = vmatpush.msra.mxu0 0.0
      %985 = vmatpush.msra.mxu0 0.0
      %986 = vmatpush.msra.mxu0 0.0
      %987 = vmatpush.msra.mxu0 0.0
      %988 = vmatpush.msra.mxu0 0.0
      %989 = vmatpush.msra.mxu0 0.0
      %990 = vmatpush.msra.mxu0 0.0
      %991 = vmatpush.msra.mxu0 0.0
      %992 = vmatpush.msra.mxu0 0.0
      %993 = vmatpush.msra.mxu0 %v970
      %994 = vmatmul.f32.gmra.mxu0 %v973
      %v995 = vpop.f32.mrf.mxu0
      %v996 = vadd.f32 0.0, %v995
      %997 = vmatmul.f32.gmra.mxu0 %v976
      %v998 = vpop.f32.mrf.mxu0
      %v999 = vadd.f32 0.0, %v998
      %1000 = vdwg.mxu0
      %v1001 = vadd.f32 %v960, %v996
      %v1002 = vadd.f32 %v961, %v999
      %s1003 = scalar_lea.vmem %s3, 144
      %v1004 = vld [vmem:[%s1003] sm:$0xff]
      %v1005 = vld [vmem:[%s1003 + $0x8] sm:$0xff]
      %1006 = vrot.lane.b32.xlu0 %v646, 119
      %v1007 = vpop.permute.xlu0 %1006
      %1008 = vrot.lane.b32.xlu0 %v647, 119
      %v1009 = vpop.permute.xlu0 %1008
      %vm1010 = vcmask 973824
      %v1011 = vsel %vm1010, %v1007, %v1009
      %v1014 = vsel %vm645, %v1004, 0
      %v1017 = vsel %vm645, %v1005, 0
      %1019 = vmatpush.msra.mxu0 0.0
      %1020 = vmatpush.msra.mxu0 0.0
      %1021 = vmatpush.msra.mxu0 0.0
      %1022 = vmatpush.msra.mxu0 0.0
      %1023 = vmatpush.msra.mxu0 0.0
      %1024 = vmatpush.msra.mxu0 0.0
      %1025 = vmatpush.msra.mxu0 0.0
      %1026 = vmatpush.msra.mxu0 0.0
      %1027 = vmatpush.msra.mxu0 0.0
      %1028 = vmatpush.msra.mxu0 0.0
      %1029 = vmatpush.msra.mxu0 0.0
      %1030 = vmatpush.msra.mxu0 0.0
      %1031 = vmatpush.msra.mxu0 0.0
      %1032 = vmatpush.msra.mxu0 0.0
      %1033 = vmatpush.msra.mxu0 0.0
      %1034 = vmatpush.msra.mxu0 %v1011
      %1035 = vmatmul.f32.gmra.mxu0 %v1014
      %v1036 = vpop.f32.mrf.mxu0
      %v1037 = vadd.f32 0.0, %v1036
      %1038 = vmatmul.f32.gmra.mxu0 %v1017
      %v1039 = vpop.f32.mrf.mxu0
      %v1040 = vadd.f32 0.0, %v1039
      %1041 = vdwg.mxu0
      %v1042 = vadd.f32 %v1001, %v1037
      %v1043 = vadd.f32 %v1002, %v1040
      %s1044 = scalar_lea.vmem %s3, 160
      %v1045 = vld [vmem:[%s1044] sm:$0xff]
      %v1046 = vld [vmem:[%s1044 + $0x8] sm:$0xff]
      %1047 = vrot.lane.b32.xlu0 %v646, 118
      %v1048 = vpop.permute.xlu0 %1047
      %1049 = vrot.lane.b32.xlu0 %v647, 118
      %v1050 = vpop.permute.xlu0 %1049
      %vm1051 = vcmask 965632
      %v1052 = vsel %vm1051, %v1048, %v1050
      %v1055 = vsel %vm645, %v1045, 0
      %v1058 = vsel %vm645, %v1046, 0
      %1060 = vmatpush.msra.mxu0 0.0
      %1061 = vmatpush.msra.mxu0 0.0
      %1062 = vmatpush.msra.mxu0 0.0
      %1063 = vmatpush.msra.mxu0 0.0
      %1064 = vmatpush.msra.mxu0 0.0
      %1065 = vmatpush.msra.mxu0 0.0
      %1066 = vmatpush.msra.mxu0 0.0
      %1067 = vmatpush.msra.mxu0 0.0
      %1068 = vmatpush.msra.mxu0 0.0
      %1069 = vmatpush.msra.mxu0 0.0
      %1070 = vmatpush.msra.mxu0 0.0
      %1071 = vmatpush.msra.mxu0 0.0
      %1072 = vmatpush.msra.mxu0 0.0
      %1073 = vmatpush.msra.mxu0 0.0
      %1074 = vmatpush.msra.mxu0 0.0
      %1075 = vmatpush.msra.mxu0 %v1052
      %1076 = vmatmul.f32.gmra.mxu0 %v1055
      %v1077 = vpop.f32.mrf.mxu0
      %v1078 = vadd.f32 0.0, %v1077
      %1079 = vmatmul.f32.gmra.mxu0 %v1058
      %v1080 = vpop.f32.mrf.mxu0
      %v1081 = vadd.f32 0.0, %v1080
      %1082 = vdwg.mxu0
      %v1083 = vadd.f32 %v1042, %v1078
      %v1084 = vadd.f32 %v1043, %v1081
      %s1085 = scalar_lea.vmem %s3, 176
      %v1086 = vld [vmem:[%s1085] sm:$0xff]
      %v1087 = vld [vmem:[%s1085 + $0x8] sm:$0xff]
      %1088 = vrot.lane.b32.xlu0 %v646, 117
      %v1089 = vpop.permute.xlu0 %1088
      %1090 = vrot.lane.b32.xlu0 %v647, 117
      %v1091 = vpop.permute.xlu0 %1090
      %vm1092 = vcmask 957440
      %v1093 = vsel %vm1092, %v1089, %v1091
      %v1096 = vsel %vm645, %v1086, 0
      %v1099 = vsel %vm645, %v1087, 0
      %1101 = vmatpush.msra.mxu0 0.0
      %1102 = vmatpush.msra.mxu0 0.0
      %1103 = vmatpush.msra.mxu0 0.0
      %1104 = vmatpush.msra.mxu0 0.0
      %1105 = vmatpush.msra.mxu0 0.0
      %1106 = vmatpush.msra.mxu0 0.0
      %1107 = vmatpush.msra.mxu0 0.0
      %1108 = vmatpush.msra.mxu0 0.0
      %1109 = vmatpush.msra.mxu0 0.0
      %1110 = vmatpush.msra.mxu0 0.0
      %1111 = vmatpush.msra.mxu0 0.0
      %1112 = vmatpush.msra.mxu0 0.0
      %1113 = vmatpush.msra.mxu0 0.0
      %1114 = vmatpush.msra.mxu0 0.0
      %1115 = vmatpush.msra.mxu0 0.0
      %1116 = vmatpush.msra.mxu0 %v1093
      %1117 = vmatmul.f32.gmra.mxu0 %v1096
      %v1118 = vpop.f32.mrf.mxu0
      %v1119 = vadd.f32 0.0, %v1118
      %1120 = vmatmul.f32.gmra.mxu0 %v1099
      %v1121 = vpop.f32.mrf.mxu0
      %v1122 = vadd.f32 0.0, %v1121
      %1123 = vdwg.mxu0
      %v1124 = vadd.f32 %v1083, %v1119
      %v1125 = vadd.f32 %v1084, %v1122
      %s1126 = scalar_lea.vmem %s3, 192
      %v1127 = vld [vmem:[%s1126] sm:$0xff]
      %v1128 = vld [vmem:[%s1126 + $0x8] sm:$0xff]
      %1129 = vrot.lane.b32.xlu0 %v646, 116
      %v1130 = vpop.permute.xlu0 %1129
      %1131 = vrot.lane.b32.xlu0 %v647, 116
      %v1132 = vpop.permute.xlu0 %1131
      %vm1133 = vcmask 949248
      %v1134 = vsel %vm1133, %v1130, %v1132
      %v1137 = vsel %vm645, %v1127, 0
      %v1140 = vsel %vm645, %v1128, 0
      %1142 = vmatpush.msra.mxu0 0.0
      %1143 = vmatpush.msra.mxu0 0.0
      %1144 = vmatpush.msra.mxu0 0.0
      %1145 = vmatpush.msra.mxu0 0.0
      %1146 = vmatpush.msra.mxu0 0.0
      %1147 = vmatpush.msra.mxu0 0.0
      %1148 = vmatpush.msra.mxu0 0.0
      %1149 = vmatpush.msra.mxu0 0.0
      %1150 = vmatpush.msra.mxu0 0.0
      %1151 = vmatpush.msra.mxu0 0.0
      %1152 = vmatpush.msra.mxu0 0.0
      %1153 = vmatpush.msra.mxu0 0.0
      %1154 = vmatpush.msra.mxu0 0.0
      %1155 = vmatpush.msra.mxu0 0.0
      %1156 = vmatpush.msra.mxu0 0.0
      %1157 = vmatpush.msra.mxu0 %v1134
      %1158 = vmatmul.f32.gmra.mxu0 %v1137
      %v1159 = vpop.f32.mrf.mxu0
      %v1160 = vadd.f32 0.0, %v1159
      %1161 = vmatmul.f32.gmra.mxu0 %v1140
      %v1162 = vpop.f32.mrf.mxu0
      %v1163 = vadd.f32 0.0, %v1162
      %1164 = vdwg.mxu0
      %v1165 = vadd.f32 %v1124, %v1160
      %v1166 = vadd.f32 %v1125, %v1163
      %s1167 = scalar_lea.vmem %s3, 208
      %v1168 = vld [vmem:[%s1167] sm:$0xff]
      %v1169 = vld [vmem:[%s1167 + $0x8] sm:$0xff]
      %1170 = vrot.lane.b32.xlu0 %v646, 115
      %v1171 = vpop.permute.xlu0 %1170
      %1172 = vrot.lane.b32.xlu0 %v647, 115
      %v1173 = vpop.permute.xlu0 %1172
      %vm1174 = vcmask 941056
      %v1175 = vsel %vm1174, %v1171, %v1173
      %v1178 = vsel %vm645, %v1168, 0
      %v1181 = vsel %vm645, %v1169, 0
      %1183 = vmatpush.msra.mxu0 0.0
      %1184 = vmatpush.msra.mxu0 0.0
      %1185 = vmatpush.msra.mxu0 0.0
      %1186 = vmatpush.msra.mxu0 0.0
      %1187 = vmatpush.msra.mxu0 0.0
      %1188 = vmatpush.msra.mxu0 0.0
      %1189 = vmatpush.msra.mxu0 0.0
      %1190 = vmatpush.msra.mxu0 0.0
      %1191 = vmatpush.msra.mxu0 0.0
      %1192 = vmatpush.msra.mxu0 0.0
      %1193 = vmatpush.msra.mxu0 0.0
      %1194 = vmatpush.msra.mxu0 0.0
      %1195 = vmatpush.msra.mxu0 0.0
      %1196 = vmatpush.msra.mxu0 0.0
      %1197 = vmatpush.msra.mxu0 0.0
      %1198 = vmatpush.msra.mxu0 %v1175
      %1199 = vmatmul.f32.gmra.mxu0 %v1178
      %v1200 = vpop.f32.mrf.mxu0
      %v1201 = vadd.f32 0.0, %v1200
      %1202 = vmatmul.f32.gmra.mxu0 %v1181
      %v1203 = vpop.f32.mrf.mxu0
      %v1204 = vadd.f32 0.0, %v1203
      %1205 = vdwg.mxu0
      %v1206 = vadd.f32 %v1165, %v1201
      %v1207 = vadd.f32 %v1166, %v1204
      %s1208 = scalar_lea.vmem %s3, 224
      %v1209 = vld [vmem:[%s1208] sm:$0xff]
      %v1210 = vld [vmem:[%s1208 + $0x8] sm:$0xff]
      %1211 = vrot.lane.b32.xlu0 %v646, 114
      %v1212 = vpop.permute.xlu0 %1211
      %1213 = vrot.lane.b32.xlu0 %v647, 114
      %v1214 = vpop.permute.xlu0 %1213
      %vm1215 = vcmask 932864
      %v1216 = vsel %vm1215, %v1212, %v1214
      %v1219 = vsel %vm645, %v1209, 0
      %v1222 = vsel %vm645, %v1210, 0
      %1224 = vmatpush.msra.mxu0 0.0
      %1225 = vmatpush.msra.mxu0 0.0
      %1226 = vmatpush.msra.mxu0 0.0
      %1227 = vmatpush.msra.mxu0 0.0
      %1228 = vmatpush.msra.mxu0 0.0
      %1229 = vmatpush.msra.mxu0 0.0
      %1230 = vmatpush.msra.mxu0 0.0
      %1231 = vmatpush.msra.mxu0 0.0
      %1232 = vmatpush.msra.mxu0 0.0
      %1233 = vmatpush.msra.mxu0 0.0
      %1234 = vmatpush.msra.mxu0 0.0
      %1235 = vmatpush.msra.mxu0 0.0
      %1236 = vmatpush.msra.mxu0 0.0
      %1237 = vmatpush.msra.mxu0 0.0
      %1238 = vmatpush.msra.mxu0 0.0
      %1239 = vmatpush.msra.mxu0 %v1216
      %1240 = vmatmul.f32.gmra.mxu0 %v1219
      %v1241 = vpop.f32.mrf.mxu0
      %v1242 = vadd.f32 0.0, %v1241
      %1243 = vmatmul.f32.gmra.mxu0 %v1222
      %v1244 = vpop.f32.mrf.mxu0
      %v1245 = vadd.f32 0.0, %v1244
      %1246 = vdwg.mxu0
      %v1247 = vadd.f32 %v1206, %v1242
      %v1248 = vadd.f32 %v1207, %v1245
      %s1249 = scalar_lea.vmem %s3, 240
      %v1250 = vld [vmem:[%s1249] sm:$0xff]
      %v1251 = vld [vmem:[%s1249 + $0x8] sm:$0xff]
      %1252 = vrot.lane.b32.xlu0 %v646, 113
      %v1253 = vpop.permute.xlu0 %1252
      %1254 = vrot.lane.b32.xlu0 %v647, 113
      %v1255 = vpop.permute.xlu0 %1254
      %vm1256 = vcmask 924672
      %v1257 = vsel %vm1256, %v1253, %v1255
      %v1260 = vsel %vm645, %v1250, 0
      %v1263 = vsel %vm645, %v1251, 0
      %1265 = vmatpush.msra.mxu0 0.0
      %1266 = vmatpush.msra.mxu0 0.0
      %1267 = vmatpush.msra.mxu0 0.0
      %1268 = vmatpush.msra.mxu0 0.0
      %1269 = vmatpush.msra.mxu0 0.0
      %1270 = vmatpush.msra.mxu0 0.0
      %1271 = vmatpush.msra.mxu0 0.0
      %1272 = vmatpush.msra.mxu0 0.0
      %1273 = vmatpush.msra.mxu0 0.0
      %1274 = vmatpush.msra.mxu0 0.0
      %1275 = vmatpush.msra.mxu0 0.0
      %1276 = vmatpush.msra.mxu0 0.0
      %1277 = vmatpush.msra.mxu0 0.0
      %1278 = vmatpush.msra.mxu0 0.0
      %1279 = vmatpush.msra.mxu0 0.0
      %1280 = vmatpush.msra.mxu0 %v1257
      %1281 = vmatmul.f32.gmra.mxu0 %v1260
      %v1282 = vpop.f32.mrf.mxu0
      %v1283 = vadd.f32 0.0, %v1282
      %1284 = vmatmul.f32.gmra.mxu0 %v1263
      %v1285 = vpop.f32.mrf.mxu0
      %v1286 = vadd.f32 0.0, %v1285
      %1287 = vdwg.mxu0
      %v1288 = vadd.f32 %v1247, %v1283
      %v1289 = vadd.f32 %v1248, %v1286
      %s1290 = scalar_lea.vmem %s3, 256
      %v1291 = vld [vmem:[%s1290] sm:$0xff]
      %v1292 = vld [vmem:[%s1290 + $0x8] sm:$0xff]
      %1293 = vrot.lane.b32.xlu0 %v646, 112
      %v1294 = vpop.permute.xlu0 %1293
      %1295 = vrot.lane.b32.xlu0 %v647, 112
      %v1296 = vpop.permute.xlu0 %1295
      %vm1297 = vcmask 916480
      %v1298 = vsel %vm1297, %v1294, %v1296
      %v1301 = vsel %vm645, %v1291, 0
      %v1304 = vsel %vm645, %v1292, 0
      %1306 = vmatpush.msra.mxu0 0.0
      %1307 = vmatpush.msra.mxu0 0.0
      %1308 = vmatpush.msra.mxu0 0.0
      %1309 = vmatpush.msra.mxu0 0.0
      %1310 = vmatpush.msra.mxu0 0.0
      %1311 = vmatpush.msra.mxu0 0.0
      %1312 = vmatpush.msra.mxu0 0.0
      %1313 = vmatpush.msra.mxu0 0.0
      %1314 = vmatpush.msra.mxu0 0.0
      %1315 = vmatpush.msra.mxu0 0.0
      %1316 = vmatpush.msra.mxu0 0.0
      %1317 = vmatpush.msra.mxu0 0.0
      %1318 = vmatpush.msra.mxu0 0.0
      %1319 = vmatpush.msra.mxu0 0.0
      %1320 = vmatpush.msra.mxu0 0.0
      %1321 = vmatpush.msra.mxu0 %v1298
      %1322 = vmatmul.f32.gmra.mxu0 %v1301
      %v1323 = vpop.f32.mrf.mxu0
      %v1324 = vadd.f32 0.0, %v1323
      %1325 = vmatmul.f32.gmra.mxu0 %v1304
      %v1326 = vpop.f32.mrf.mxu0
      %v1327 = vadd.f32 0.0, %v1326
      %1328 = vdwg.mxu0
      %v1329 = vadd.f32 %v1288, %v1324
      %v1330 = vadd.f32 %v1289, %v1327
      %v1331 = vld [vmem:[%s7] sm:$0xff]
      %v1332 = vld [vmem:[%s7 + $0x8] sm:$0xff]
      %1334 = vset.pattern.permute.xlu0 3
      %1335 = vperm.xlu0 %1334, %v1331
      %v1336 = vpop.permute.xlu0 %1335
      %1339 = vset.pattern.permute.xlu0 3
      %1340 = vperm.xlu0 %1339, %v1332
      %v1341 = vpop.permute.xlu0 %1340
      %v1343 = vadd.f32 %v1329, %v1336
      %v1344 = vadd.f32 %v1330, %v1341
      %v1345 = vmax.f32 %v1343, 0.0
      %v1346 = vmax.f32 %v1344, 0.0
      %v1347 = vld [vmem:[%s4] sm:$0xff]
      %v1348 = vld [vmem:[%s7] sm:$0xff]
      %1350 = vset.pattern.permute.xlu0 4
      %1351 = vperm.xlu0 %1350, %v1348
      %v1352 = vpop.permute.xlu0 %1351
      %v1355 = vsel %vm605, %v1347, 0
      %1357 = vmatpush.msra.mxu0 0.0
      %1358 = vmatpush.msra.mxu0 0.0
      %1359 = vmatpush.msra.mxu0 0.0
      %1360 = vmatpush.msra.mxu0 0.0
      %1361 = vmatpush.msra.mxu0 0.0
      %1362 = vmatpush.msra.mxu0 0.0
      %1363 = vmatpush.msra.mxu0 0.0
      %1364 = vmatpush.msra.mxu0 0.0
      %1365 = vmatpush.msra.mxu0 0.0
      %1366 = vmatpush.msra.mxu0 0.0
      %1367 = vmatpush.msra.mxu0 0.0
      %1368 = vmatpush.msra.mxu0 0.0
      %1369 = vmatpush.msra.mxu0 0.0
      %1370 = vmatpush.msra.mxu0 0.0
      %1371 = vmatpush.msra.mxu0 %v1346
      %1372 = vmatpush.msra.mxu0 %v1345
      %1373 = vmatmul.f32.gmra.mxu0 %v1355
      %v1374 = vpop.f32.mrf.mxu0
      %v1375 = vadd.f32 %v1352, %v1374
      %1376 = vdwg.mxu0
      %vm1377 = vcmp.ne.f32.partialorder %v640, 0.0
      %v1378 = vsel %vm1377, 1, 0
      %v1379 = vcvt.s32.f32 %v1378
      %v1380 = vmul.f32 %v1375, %v1379
      %v1381 = vld [vmem:[%s5] sm:$0xff]
      %v1382 = vld [vmem:[%s5 + $0x8] sm:$0xff]
      %1383 = vset.pattern.permute.xlu0 5
      %1384 = vperm.xlu0 %1383, %v1331
      %v1385 = vpop.permute.xlu0 %1384
      %1387 = vset.pattern.permute.xlu0 5
      %1388 = vperm.xlu0 %1387, %v1332
      %v1389 = vpop.permute.xlu0 %1388
      %v1392 = vsel %vm645, %v1381, 0
      %v1395 = vsel %vm645, %v1382, 0
      %1397 = vmatpush.msra.mxu0 0.0
      %1398 = vmatpush.msra.mxu0 0.0
      %1399 = vmatpush.msra.mxu0 0.0
      %1400 = vmatpush.msra.mxu0 0.0
      %1401 = vmatpush.msra.mxu0 0.0
      %1402 = vmatpush.msra.mxu0 0.0
      %1403 = vmatpush.msra.mxu0 0.0
      %1404 = vmatpush.msra.mxu0 0.0
      %1405 = vmatpush.msra.mxu0 0.0
      %1406 = vmatpush.msra.mxu0 0.0
      %1407 = vmatpush.msra.mxu0 0.0
      %1408 = vmatpush.msra.mxu0 0.0
      %1409 = vmatpush.msra.mxu0 0.0
      %1410 = vmatpush.msra.mxu0 0.0
      %1411 = vmatpush.msra.mxu0 0.0
      %1412 = vmatpush.msra.mxu0 %v1380
      %1413 = vmatmul.f32.gmra.mxu0 %v1392
      %v1414 = vpop.f32.mrf.mxu0
      %v1415 = vadd.f32 %v1385, %v1414
      %1416 = vmatmul.f32.gmra.mxu0 %v1395
      %v1417 = vpop.f32.mrf.mxu0
      %v1418 = vadd.f32 %v1389, %v1417
      %1419 = vdwg.mxu0
      %v1420 = vmax.f32 %v1415, 0.0
      %v1421 = vmax.f32 %v1418, 0.0
      %v1422 = vld [vmem:[%s6] sm:$0x7]
      %v1423 = vld [vmem:[%s7] sm:$0x7]
      %1425 = vset.pattern.permute.xlu0 6
      %1426 = vperm.xlu0 %1425, %v1423
      %v1427 = vpop.permute.xlu0 %1426
      %v1430 = vsel %vm605, %v1422, 0
      %1432 = vmatpush.msra.mxu0 0.0
      %1433 = vmatpush.msra.mxu0 0.0
      %1434 = vmatpush.msra.mxu0 0.0
      %1435 = vmatpush.msra.mxu0 0.0
      %1436 = vmatpush.msra.mxu0 0.0
      %1437 = vmatpush.msra.mxu0 0.0
      %1438 = vmatpush.msra.mxu0 0.0
      %1439 = vmatpush.msra.mxu0 0.0
      %1440 = vmatpush.msra.mxu0 0.0
      %1441 = vmatpush.msra.mxu0 0.0
      %1442 = vmatpush.msra.mxu0 0.0
      %1443 = vmatpush.msra.mxu0 0.0
      %1444 = vmatpush.msra.mxu0 0.0
      %1445 = vmatpush.msra.mxu0 0.0
      %1446 = vmatpush.msra.mxu0 %v1421
      %1447 = vmatpush.msra.mxu0 %v1420
      %1448 = vmatmul.f32.gmra.mxu0 %v1430
      %v1449 = vpop.f32.mrf.mxu0
      %v1450 = vadd.f32 %v1427, %v1449
      %1451 = vdwg.mxu0
      %v1453 = vrot.slane %v597, 2
      %v1455 = vadd.f32 %v1450, %v1453
      %1456 = vst [vmem:[%s300] sm:$0x7] %v1455
      %p1457 = scmp.lt.s32.totalorder %s19, 1
      %s1458 = scalar_select %p1457, %s19, 1
      %s1459 = smul.addr %s1458, 4
      %s1460 = scalar_lea.vmem %s8, %s1459
      // Predicated region
      $region53: #{tpu_custom_call.1} parent=51 // pred_check
        %p1461 = pneg %p210
      $region54: #{tpu_custom_call.1} parent=51 // pred_check_branch
        %1463 = sbr.rel (%p1461) target = $region56
      $region55: #{tpu_custom_call.1} parent=51 // pred_region
        _
      $region56: #{tpu_custom_call.1} parent=51 // pred_fallthru
        _
    $region52: #{tpu_custom_call.1} parent=5 // pred_fallthru
      _
    %p1464 = scmp.le.s32.totalorder 2, %s14
    // Predicated region
    $region57: #{tpu_custom_call.1} parent=5 // pred_check
      %p1465 = pneg %p1464
    $region58: #{tpu_custom_call.1} parent=5 // pred_check_branch
      %1467 = sbr.rel (%p1465) target = $region60
    $region59: #{tpu_custom_call.1} parent=5 // pred_region
      %s1468 = ssub.s32 %s14, 2
      // Predicated region
      $region61: #{tpu_custom_call.1} parent=59 // pred_check
        %p1469 = pneg %p216
      $region62: #{tpu_custom_call.1} parent=59 // pred_check_branch
        %1471 = sbr.rel (%p1469) target = $region64
      $region63: #{tpu_custom_call.1} parent=59 // pred_region
        %p1472 = scmp.lt.s32.totalorder %s20, 1
        %s1473 = scalar_select %p1472, %s20, 1
        %s1474 = smul.addr %s1473, 4
        %s1475 = scalar_lea.vmem %s8, %s1474
      $region64: #{tpu_custom_call.1} parent=59 // pred_fallthru
        _
    $region60: #{tpu_custom_call.1} parent=5 // pred_fallthru
      _
  $region6: #{tpu_custom_call.1} parent=0 // loop_footer
    %s18 = sadd.s32 1, %s14
  $region7: #{tpu_custom_call.1} parent=0 // loop_footer_branch
    %13 = sbr.rel target = $region3
  $region8: #{tpu_custom_call.1} parent=0 // loop_exit
    _

</llo_original>
